<compile_context>
chip_gen: v7x
topology: tpu7x:2x2x1
jax: 0.10.0
libtpu: 0.0.40
codegen_flags: <defaults>
</compile_context>

<pallas_src>
import functools
import math

import jax
import jax.numpy as jnp
from jax.experimental import pallas as pl
from jax.experimental.pallas import tpu as pltpu


def _round_up(x, m):
    return (x + m - 1) // m * m


def _detect_vmem_limit_bytes():
    """Generation-aware scoped-VMEM budget (v7x has 64 MiB physical VMEM)."""
    try:
        kind = jax.devices()[0].device_kind.lower()
    except Exception:
        kind = ""
    phys = 64 * 1024 * 1024 if "v7" in kind else 128 * 1024 * 1024
    return min(phys // 2 - 8 * 1024 * 1024, 48 * 1024 * 1024)


_VMEM_LIMIT = _detect_vmem_limit_bytes()


# ---------------------------------------------------------------------------
# Kernel 1: tiled matmul, optional fused BN affine / residual / ReLU epilogue
# ---------------------------------------------------------------------------
def _make_mm_kernel(*, relu, affine, res, multi_k):
    def epilogue(acc, ins):
        y = acc
        if affine:
            y = y * ins[2][...] + ins[3][...]
        if res:
            r_ref = ins[4] if affine else ins[2]
            y = y + r_ref[...].astype(jnp.float32)
        if relu:
            y = jnp.maximum(y, 0.0)
        return y

    if multi_k:
        def kernel(*refs):
            *ins, o_ref, acc_ref = refs

            @pl.when(pl.program_id(2) == 0)
            def _():
                acc_ref[...] = jnp.zeros_like(acc_ref)

            acc_ref[...] += jnp.dot(ins[0][...], ins[1][...],
                                    preferred_element_type=jnp.float32)

            @pl.when(pl.program_id(2) == pl.num_programs(2) - 1)
            def _():
                o_ref[...] = epilogue(acc_ref[...], ins).astype(o_ref.dtype)
    else:
        def kernel(*refs):
            *ins, o_ref = refs
            acc = jnp.dot(ins[0][...], ins[1][...],
                          preferred_element_type=jnp.float32)
            o_ref[...] = epilogue(acc, ins).astype(o_ref.dtype)

    return kernel


def _mm_tiles(m, k, n):
    mp = _round_up(m, 8)
    if mp <= 1024:
        tm = mp
    else:
        mp = _round_up(m, 512)
        tm = 1024 if mp % 1024 == 0 else 512
    np_ = _round_up(n, 128)                 # lane-dense output stores
    if np_ <= 1024:
        tn = np_
    else:
        tn = next(t for t in (512, 256, 128) if np_ % t == 0)
    kp = _round_up(k, 8)
    # Whole-K resident block (collapses the kk grid axis, drops the f32 scratch)
    # when the double-buffered block footprint fits comfortably in the VMEM budget.
    resident = 2 * 2 * (tm * kp + kp * tn + tm * tn)      # bf16, 2x buffered
    if k <= 2048 and resident <= _VMEM_LIMIT // 2:
        tk = kp
    else:
        kp = _round_up(k, 512)
        tk = 512
    return mp, tm, kp, tk, np_, tn


@functools.partial(jax.jit, static_argnames=("relu",))
def _matmul_impl(a, w, scale, bias, residual, *, relu):
    m, k = a.shape
    _, n = w.shape
    mp, tm, kp, tk, np_, tn = _mm_tiles(m, k, n)
    multi_k = kp != tk

    a_p = a if (mp == m and kp == k) else jnp.pad(a, ((0, mp - m), (0, kp - k)))
    w_p = w if (kp == k and np_ == n) else jnp.pad(w, ((0, kp - k), (0, np_ - n)))
    args = [a_p.astype(jnp.bfloat16), w_p.astype(jnp.bfloat16)]

    if multi_k:
        grid = (mp // tm, np_ // tn, kp // tk)
        a_spec = pl.BlockSpec((tm, tk), lambda i, j, kk: (i, kk))
        w_spec = pl.BlockSpec((tk, tn), lambda i, j, kk: (kk, j))
        v_spec = pl.BlockSpec((1, tn), lambda i, j, kk: (0, j))
        mn_spec = pl.BlockSpec((tm, tn), lambda i, j, kk: (i, j))
        scratch = [pltpu.VMEM((tm, tn), jnp.float32)]
        semantics = ("parallel", "parallel", "arbitrary")
    else:
        grid = (mp // tm, np_ // tn)
        a_spec = pl.BlockSpec((tm, kp), lambda i, j: (i, 0))
        w_spec = pl.BlockSpec((kp, tn), lambda i, j: (0, j))
        v_spec = pl.BlockSpec((1, tn), lambda i, j: (0, j))
        mn_spec = pl.BlockSpec((tm, tn), lambda i, j: (i, j))
        scratch = []
        semantics = ("parallel", "parallel")

    in_specs = [a_spec, w_spec]
    affine = scale is not None
    if affine:
        s_p = scale if np_ == n else jnp.pad(scale, (0, np_ - n))
        b_p = bias if np_ == n else jnp.pad(bias, (0, np_ - n))
        args += [s_p.reshape(1, np_).astype(jnp.float32),
                 b_p.reshape(1, np_).astype(jnp.float32)]
        in_specs += [v_spec, v_spec]
    res = residual is not None
    if res:
        r_p = residual
        if mp != m or np_ != n:
            r_p = jnp.pad(residual, ((0, mp - m), (0, np_ - n)))
        args.append(r_p.astype(jnp.bfloat16))
        in_specs.append(mn_spec)

    out = pl.pallas_call(
        _make_mm_kernel(relu=relu, affine=affine, res=res, multi_k=multi_k),
        out_shape=jax.ShapeDtypeStruct((mp, np_), jnp.bfloat16),
        grid_spec=pltpu.PrefetchScalarGridSpec(
            num_scalar_prefetch=0, grid=grid, in_specs=in_specs,
            out_specs=mn_spec, scratch_shapes=scratch),
        compiler_params=pltpu.CompilerParams(
            dimension_semantics=semantics, vmem_limit_bytes=_VMEM_LIMIT),
    )(*args)
    return out[:m, :n]


def matmul_affine(a, w, scale, bias, relu, residual=None):
    """maybe_relu((a @ w) * scale + bias [+ residual]); bf16 MXU, f32 accumulation."""
    return _matmul_impl(a, w, scale, bias, residual, relu=relu)


def matmul_plain(a, b):
    """a @ b with no affine epilogue (used by resize / adaptive-pool matmuls)."""
    return _matmul_impl(a, b, None, None, None, relu=False)


# ---------------------------------------------------------------------------
# Kernel 2: fused 3x3 stride-1 conv + BN affine (+ ReLU)
#   Halo'd NHWC block flattened to (H*(W+2), Cin); 9 whole-block tap matmuls.
# ---------------------------------------------------------------------------
def _conv3x3_tapsum(x, w_ref, m_acc, wp):
    """x: (hp*wp, tc) bf16; returns f32 (m_acc, tco) = sum of 9 shifted tap matmuls."""
    acc = None
    for di in range(3):
        for dj in range(3):
            off = di * wp + dj
            t = x[off:off + m_acc, :]
            d = jnp.dot(t, w_ref[di, dj], preferred_element_type=jnp.float32)
            acc = d if acc is None else acc + d
    return acc


def _conv3x3_kernel_1c(x_ref, w_ref, s_ref, b_ref, o_ref, *, relu, m_acc, wp):
    y = _conv3x3_tapsum(x_ref[...], w_ref, m_acc, wp)
    y = y * s_ref[...] + b_ref[...]
    if relu:
        y = jnp.maximum(y, 0.0)
    o_ref[...] = y.astype(o_ref.dtype)


def _conv3x3_kernel_mc(x_ref, w_ref, s_ref, b_ref, o_ref, acc_ref, *,
                       relu, m_acc, wp):
    c = pl.program_id(2)
    y = _conv3x3_tapsum(x_ref[...], w_ref, m_acc, wp)

    @pl.when(c == 0)
    def _():
        acc_ref[...] = y

    @pl.when(c > 0)
    def _():
        acc_ref[...] = acc_ref[...] + y

    @pl.when(c == pl.num_programs(2) - 1)
    def _():
        z = acc_ref[...] * s_ref[...] + b_ref[...]
        if relu:
            z = jnp.maximum(z, 0.0)
        o_ref[...] = z.astype(o_ref.dtype)


@functools.partial(jax.jit, static_argnames=("relu",))
def conv3x3_bn_act_fused(x, w, scale, bias, *, relu):
    """3x3, stride 1, pad 1 conv + folded-BN affine (+ ReLU); no HBM im2col."""
    n, h, ww, cin = x.shape
    cout = w.shape[-1]
    hp, wp = h + 2, ww + 2
    m_acc = h * wp - 2                       # flat rows covering every valid output
    cout_p = _round_up(cout, 128)            # lane-dense output stores

    if cin <= 512:
        tc = cin
    else:
        tc = next((t for t in (512, 256, 128) if cin % t == 0), None)
    assert tc is not None and cin % tc == 0, f"untileable cin={cin}"
    if cout_p <= 512:
        tco = cout_p
    else:
        tco = next((t for t in (512, 256, 128) if cout_p % t == 0), None)
    assert tco is not None and cout_p % tco == 0, f"untileable cout={cout}"

    xflat = jnp.pad(x, ((0, 0), (1, 1), (1, 1), (0, 0))).astype(
        jnp.bfloat16).reshape(n, hp * wp, cin)
    w_p = w if cout_p == cout else jnp.pad(
        w, ((0, 0), (0, 0), (0, 0), (0, cout_p - cout)))
    s_p = scale if cout_p == cout else jnp.pad(scale, (0, cout_p - cout))
    b_p = bias if cout_p == cout else jnp.pad(bias, (0, cout_p - cout))
    s_p = s_p.reshape(1, cout_p).astype(jnp.float32)
    b_p = b_p.reshape(1, cout_p).astype(jnp.float32)

    n_csteps = cin // tc
    if n_csteps == 1:
        kernel = functools.partial(_conv3x3_kernel_1c, relu=relu, m_acc=m_acc, wp=wp)
        scratch = []
    else:
        kernel = functools.partial(_conv3x3_kernel_mc, relu=relu, m_acc=m_acc, wp=wp)
        scratch = [pltpu.VMEM((m_acc, tco), jnp.float32)]

    out = pl.pallas_call(
        kernel,
        out_shape=jax.ShapeDtypeStruct((n, m_acc, cout_p), jnp.bfloat16),
        grid_spec=pltpu.PrefetchScalarGridSpec(
            num_scalar_prefetch=0,
            grid=(n, cout_p // tco, n_csteps),
            in_specs=[
                pl.BlockSpec((None, hp * wp, tc), lambda b, j, c: (b, 0, c)),
                pl.BlockSpec((3, 3, tc, tco), lambda b, j, c: (0, 0, c, j)),
                pl.BlockSpec((1, tco), lambda b, j, c: (0, j)),
                pl.BlockSpec((1, tco), lambda b, j, c: (0, j)),
            ],
            out_specs=pl.BlockSpec((None, m_acc, tco), lambda b, j, c: (b, 0, j)),
            scratch_shapes=scratch),
        compiler_params=pltpu.CompilerParams(
            dimension_semantics=("parallel", "parallel", "arbitrary"),
            vmem_limit_bytes=_VMEM_LIMIT),
    )(xflat, w_p.astype(jnp.bfloat16), s_p, b_p)

    # (n, h*wp-2, cout_p) -> pad 2 junk rows -> (n, h, wp, cout_p) -> valid cols/chans.
    out = jnp.pad(out, ((0, 0), (0, h * wp - m_acc), (0, 0)))
    out = out.reshape(n, h, wp, cout_p)[:, :, :ww, :cout]
    return out


# ---------------------------------------------------------------------------
# Kernel 3: 3x3 / stride 2 max pool (parity-split input, 9-tap max in-kernel)
# ---------------------------------------------------------------------------
def _maxpool3x3s2_kernel(ee_ref, eo_ref, oe_ref, oo_ref, o_ref, *, oh, ow):
    ee = ee_ref[...]
    eo = eo_ref[...]
    oe = oe_ref[...]
    oo = oo_ref[...]
    m = ee[:oh, :ow]
    m = jnp.maximum(m, eo[:oh, :ow])
    m = jnp.maximum(m, ee[:oh, 1:ow + 1])
    m = jnp.maximum(m, oe[:oh, :ow])
    m = jnp.maximum(m, oo[:oh, :ow])
    m = jnp.maximum(m, oe[:oh, 1:ow + 1])
    m = jnp.maximum(m, ee[1:oh + 1, :ow])
    m = jnp.maximum(m, eo[1:oh + 1, :ow])
    m = jnp.maximum(m, ee[1:oh + 1, 1:ow + 1])
    o_ref[...] = m


@jax.jit
def max_pool_3x3_s2(x):
    n, h, w, c = x.shape
    assert h % 2 == 0 and w % 2 == 0
    oh, ow = h // 2, w // 2
    xp = jnp.pad(x, ((0, 0), (1, 1), (1, 1), (0, 0)),
                 constant_values=jnp.finfo(x.dtype).min)
    # Parity split (cheap XLA slices) so all in-kernel taps are unit-shifted views.
    ee = xp[:, 0::2, 0::2, :]
    eo = xp[:, 0::2, 1::2, :]
    oe = xp[:, 1::2, 0::2, :]
    oo = xp[:, 1::2, 1::2, :]
    par_spec = pl.BlockSpec((None, oh + 1, ow + 1, c), lambda b: (b, 0, 0, 0))
    return pl.pallas_call(
        functools.partial(_maxpool3x3s2_kernel, oh=oh, ow=ow),
        out_shape=jax.ShapeDtypeStruct((n, oh, ow, c), x.dtype),
        grid_spec=pltpu.PrefetchScalarGridSpec(
            num_scalar_prefetch=0, grid=(n,),
            in_specs=[par_spec, par_spec, par_spec, par_spec],
            out_specs=pl.BlockSpec((None, oh, ow, c), lambda b: (b, 0, 0, 0))),
        compiler_params=pltpu.CompilerParams(
            dimension_semantics=("parallel",), vmem_limit_bytes=_VMEM_LIMIT),
    )(ee, eo, oe, oo)


# ---------------------------------------------------------------------------
# Conv / pool / resize building blocks (JAX glue; compute in Pallas)
# ---------------------------------------------------------------------------
def _im2col(x, kh, kw, stride, padding):
    n, h, w, c = x.shape
    ho = (h + 2 * padding - kh) // stride + 1
    wo = (w + 2 * padding - kw) // stride + 1
    xp = jnp.pad(x, ((0, 0), (padding, padding), (padding, padding), (0, 0)))
    taps = []
    for i in range(kh):
        for j in range(kw):
            taps.append(xp[:, i:i + ho * stride:stride, j:j + wo * stride:stride, :])
    return taps, ho, wo


def conv_bn_act(x, w, scale, bias, *, stride=1, padding=0, relu=True, residual=None):
    """Conv2d + folded-BN affine (+ ReLU, + fused residual) via Pallas kernels."""
    kh, kw, cin, cout = w.shape
    if kh == 1 and kw == 1:
        if stride != 1:
            x = x[:, ::stride, ::stride, :]
        n, h, ww, _ = x.shape
        a = x.reshape(n * h * ww, cin)
        r = residual.reshape(n * h * ww, cout) if residual is not None else None
        y = matmul_affine(a, w.reshape(cin, cout), scale, bias, relu, residual=r)
        return y.reshape(n, h, ww, cout)
    if kh == 3 and kw == 3 and stride == 1 and padding == 1 and residual is None:
        return conv3x3_bn_act_fused(x, w, scale, bias, relu=relu)
    # TODO(synk): strided 3x3 convs and the 7x7/s2 stem still use im2col + matmul.
    n = x.shape[0]
    taps, ho, wo = _im2col(x, kh, kw, stride, padding)
    patches = jnp.stack(taps, axis=3).reshape(n * ho * wo, kh * kw * cin)
    r = residual.reshape(n * ho * wo, cout) if residual is not None else None
    y = matmul_affine(patches, w.reshape(kh * kw * cin, cout), scale, bias, relu,
                      residual=r)
    return y.reshape(n, ho, wo, cout)


def _interp_matrix(out_size, in_size):
    """Row matrix matching F.interpolate(bilinear, align_corners=False)."""
    dst = jnp.arange(out_size, dtype=jnp.float32)
    scale = in_size / out_size
    src = jnp.maximum((dst + 0.5) * scale - 0.5, 0.0)
    i0 = jnp.minimum(jnp.floor(src).astype(jnp.int32), in_size - 1)
    lam = src - i0.astype(jnp.float32)
    i1 = jnp.minimum(i0 + 1, in_size - 1)
    return (jax.nn.one_hot(i0, in_size, dtype=jnp.float32) * (1.0 - lam)[:, None]
            + jax.nn.one_hot(i1, in_size, dtype=jnp.float32) * lam[:, None])


def _pool_matrix(out_size, in_size):
    """Row-averaging matrix matching AdaptiveAvgPool2d bins."""
    idx = jnp.arange(in_size, dtype=jnp.int32)
    rows = []
    for i in range(out_size):
        lo = (i * in_size) // out_size
        hi = -((-(i + 1) * in_size) // out_size)
        rows.append(jnp.where((idx >= lo) & (idx < hi), 1.0 / (hi - lo), 0.0))
    return jnp.stack(rows, axis=0).astype(jnp.float32)


def _separable_hw_matmul(x, mh, mw, nchw_out=False):
    """y[n,i,j,c] = sum_{h,w} mh[i,h]*mw[j,w]*x[n,h,w,c] via two lane-dense matmuls."""
    n, h, w, c = x.shape
    oh, ow = mh.shape[0], mw.shape[0]
    # contract H; channels stay on the lane axis of the big operand
    t = jnp.transpose(x, (1, 0, 2, 3)).reshape(h, n * w * c)
    y1 = matmul_plain(mh, t)
    # contract W
    t2 = jnp.transpose(y1.reshape(oh, n, w, c), (2, 0, 1, 3)).reshape(w, oh * n * c)
    y2 = matmul_plain(mw, t2)
    y2 = y2.reshape(ow, oh, n, c)
    if nchw_out:
        return jnp.transpose(y2, (2, 3, 1, 0))      # (N, C, OH, OW)
    return jnp.transpose(y2, (2, 1, 0, 3))          # (N, OH, OW, C)


def adaptive_avg_pool(x, out_size):
    _, h, w, _ = x.shape
    return _separable_hw_matmul(x, _pool_matrix(out_size, h), _pool_matrix(out_size, w))


def bilinear_resize(x, out_h, out_w, nchw_out=False):
    _, h, w, _ = x.shape
    return _separable_hw_matmul(x, _interp_matrix(out_h, h), _interp_matrix(out_w, w),
                                nchw_out=nchw_out)


# ---------------------------------------------------------------------------
# Parameter initialization (deterministic, synthetic); conv weights stored bf16
# ---------------------------------------------------------------------------
def make_conv(key, cin, cout, kh, kw):
    fan_in = cin * kh * kw
    w = jax.random.normal(key, (kh, kw, cin, cout), jnp.float32) * math.sqrt(2.0 / fan_in)
    return w.astype(jnp.bfloat16)


def make_bn(key, c):
    kg, kb, km, kv = jax.random.split(key, 4)
    gamma = 1.0 + 0.1 * jax.random.normal(kg, (c,), jnp.float32)
    beta = 0.1 * jax.random.normal(kb, (c,), jnp.float32)
    mean = 0.1 * jax.random.normal(km, (c,), jnp.float32)
    var = 1.0 + 0.1 * jax.random.uniform(kv, (c,), jnp.float32)
    scale = gamma * jax.lax.rsqrt(var + 1e-5)
    bias = beta - mean * scale
    return scale, bias


def make_bottleneck(key, cin, planes, stride):
    ks = jax.random.split(key, 8)
    p = {
        "w1": make_conv(ks[0], cin, planes, 1, 1), "bn1": make_bn(ks[1], planes),
        "w2": make_conv(ks[2], planes, planes, 3, 3), "bn2": make_bn(ks[3], planes),
        "w3": make_conv(ks[4], planes, planes * 4, 1, 1), "bn3": make_bn(ks[5], planes * 4),
        "stride": stride,
    }
    if stride != 1 or cin != planes * 4:
        p["wd"] = make_conv(ks[6], cin, planes * 4, 1, 1)
        p["bnd"] = make_bn(ks[7], planes * 4)
    return p


def make_layer(key, cin, planes, blocks, stride):
    ks = jax.random.split(key, blocks)
    out, c, s = [], cin, stride
    for i in range(blocks):
        out.append(make_bottleneck(ks[i], c, planes, s))
        c, s = planes * 4, 1
    return out


def make_ppm(key, cin=2048, cout=512, pool_sizes=(1, 2, 3, 6)):
    ks = jax.random.split(key, 2 * len(pool_sizes) + 2)
    stages = []
    for i, ps in enumerate(pool_sizes):
        stages.append({"pool": max(ps, 2),     # matches the PyTorch spec (max(size, 2))
                       "w": make_conv(ks[2 * i], cin, cout, 1, 1),
                       "bn": make_bn(ks[2 * i + 1], cout)})
    return {"stages": stages,
            "w": make_conv(ks[-2], cin + len(pool_sizes) * cout, cout, 3, 3),
            "bn": make_bn(ks[-1], cout)}


def make_final(key, num_classes):
    k1, k2, k3, k4 = jax.random.split(key, 4)
    return {"w1": make_conv(k1, 512, 512, 3, 3), "bn1": make_bn(k2, 512),
            "w2": make_conv(k3, 512, num_classes, 1, 1),
            "b2": 0.1 * jax.random.normal(k4, (num_classes,), jnp.float32)}


def init_pspnet_params(key, num_classes):
    ks = jax.random.split(key, 8)
    return {
        "conv1": make_conv(ks[0], 3, 64, 7, 7),
        "bn1": make_bn(ks[1], 64),
        "layer1": make_layer(ks[2], 64, 64, 3, 1),
        "layer2": make_layer(ks[3], 256, 128, 4, 2),
        "layer3": make_layer(ks[4], 512, 256, 6, 2),
        "layer4": make_layer(ks[5], 1024, 512, 3, 2),
        "ppm": make_ppm(ks[6]),
        "final": make_final(ks[7], num_classes),
    }


# ---------------------------------------------------------------------------
# Forward pass
# ---------------------------------------------------------------------------
def bottleneck_forward(x, p):
    if "wd" in p:
        identity = conv_bn_act(x, p["wd"], *p["bnd"], stride=p["stride"],
                               padding=0, relu=False)
    else:
        identity = x
    out = conv_bn_act(x, p["w1"], *p["bn1"], stride=1, padding=0, relu=True)
    out = conv_bn_act(out, p["w2"], *p["bn2"], stride=p["stride"], padding=1, relu=True)
    # residual add + ReLU fused into the conv3 matmul epilogue
    out = conv_bn_act(out, p["w3"], *p["bn3"], stride=1, padding=0, relu=True,
                      residual=identity)
    return out


def ppm_forward(x, p):
    n, h, w, cin = x.shape
    stages = p["stages"]
    pooled = [adaptive_avg_pool(x, st["pool"]) for st in stages]
    # batch the four 1x1 stage convs into one matmul (shared K, weights concatenated on N)
    a = jnp.concatenate([q.reshape(-1, cin) for q in pooled], axis=0)
    w_cat = jnp.concatenate([st["w"].reshape(cin, -1) for st in stages], axis=1)
    s_cat = jnp.concatenate([st["bn"][0] for st in stages], axis=0)
    b_cat = jnp.concatenate([st["bn"][1] for st in stages], axis=0)
    y = matmul_affine(a, w_cat, s_cat, b_cat, relu=True)
    cout = stages[0]["w"].shape[-1]
    feats = [x]
    row0 = 0
    for idx, st in enumerate(stages):
        s = st["pool"]
        rows = n * s * s
        yi = y[row0:row0 + rows, idx * cout:(idx + 1) * cout].reshape(n, s, s, cout)
        row0 += rows
        feats.append(bilinear_resize(yi, h, w))
    cat = jnp.concatenate(feats, axis=-1)
    return conv_bn_act(cat, p["w"], *p["bn"], stride=1, padding=1, relu=True)


def pspnet_forward(x_nchw, params):
    _, _, h, w = x_nchw.shape
    x = jnp.transpose(x_nchw, (0, 2, 3, 1)).astype(jnp.bfloat16)     # NCHW -> NHWC
    # layer0: 7x7 s2 conv + BN + ReLU + 3x3 s2 max-pool
    x = conv_bn_act(x, params["conv1"], *params["bn1"], stride=2, padding=3, relu=True)
    x = max_pool_3x3_s2(x)
    # ResNet-50 layers 1..4
    for name in ("layer1", "layer2", "layer3", "layer4"):
        for blk in params[name]:
            x = bottleneck_forward(x, blk)
    # Pyramid pooling module
    x = ppm_forward(x, params["ppm"])
    # final head: 3x3 conv+BN+ReLU, 1x1 conv (with bias)
    f = params["final"]
    x = conv_bn_act(x, f["w1"], *f["bn1"], stride=1, padding=1, relu=True)
    nc = f["b2"].shape[0]
    x = conv_bn_act(x, f["w2"], jnp.ones((nc,), jnp.float32), f["b2"],
                    stride=1, padding=0, relu=False)
    # upsample back to the input resolution, produced directly in NCHW layout
    x = bilinear_resize(x, h, w, nchw_out=True)
    return x.astype(jnp.float32)


if __name__ == "__main__":
    num_classes = 21
    key = jax.random.PRNGKey(0)
    k_param, k_x = jax.random.split(key)
    params = init_pspnet_params(k_param, num_classes)
    # Small input consistent with the module: NCHW, 3 channels, 64x64 so the
    # stride-32 ResNet-50 backbone still produces a valid (2x2) feature map.
    x = jax.random.normal(k_x, (2, 3, 64, 64), jnp.float32)
    out = pspnet_forward(x, params)
    out = jax.block_until_ready(out)
    assert out.shape == (2, num_classes, 64, 64), out.shape
    assert bool(jnp.all(jnp.isfinite(out)))
    print("KERNEL_OK")
</pallas_src>

<mosaic_0001>
module attributes {stable_mosaic.version = 11 : i64} {
  func.func @kernel(%arg0: i32, %arg1: i32, %arg2: memref<1024x152xbf16, #tpu.memory_space<vmem>>, %arg3: memref<152x128xbf16, #tpu.memory_space<vmem>>, %arg4: memref<1x128xf32, #tpu.memory_space<vmem>>, %arg5: memref<1x128xf32, #tpu.memory_space<vmem>>, %arg6: memref<1024x128xbf16, #tpu.memory_space<vmem>>) attributes {dimension_semantics = [#tpu.dimension_semantics<parallel>, #tpu.dimension_semantics<parallel>], iteration_bounds = array<i64: 2, 1>, scalar_prefetch = 0 : i64, scratch_operands = 0 : i64, tpu.core_type = #tpu.core_type<tc>, window_params = [{transform_indices = @transform_0, window_bounds = array<i64: 1024, 152>}, {transform_indices = @transform_1, window_bounds = array<i64: 152, 128>}, {transform_indices = @transform_2, window_bounds = array<i64: 1, 128>}, {transform_indices = @transform_3, window_bounds = array<i64: 1, 128>}, {transform_indices = @transform_4, window_bounds = array<i64: 1024, 128>}]} {
    %c0 = arith.constant 0 : index
    %c0_0 = arith.constant 0 : index
    %0 = vector.load %arg2[%c0, %c0_0] : memref<1024x152xbf16, #tpu.memory_space<vmem>>, vector<1024x152xbf16>
    %c0_1 = arith.constant 0 : index
    %c0_2 = arith.constant 0 : index
    %1 = vector.load %arg3[%c0_1, %c0_2] : memref<152x128xbf16, #tpu.memory_space<vmem>>, vector<152x128xbf16>
    %cst = arith.constant dense<0.000000e+00> : vector<1024x128xf32>
    %2 = tpu.matmul %0, %1, %cst {dimension_numbers = #tpu.dot_dimension_numbers<[1], [0], [0], [1], [0, 0, 1, 1], [], []>} : vector<1024x152xbf16>, vector<152x128xbf16>, vector<1024x128xf32> -> vector<1024x128xf32>
    %c0_3 = arith.constant 0 : index
    %c0_4 = arith.constant 0 : index
    %3 = vector.load %arg4[%c0_3, %c0_4] : memref<1x128xf32, #tpu.memory_space<vmem>>, vector<1x128xf32>
    %4 = vector.broadcast %3 : vector<1x128xf32> to vector<1024x128xf32>
    %5 = arith.mulf %2, %4 : vector<1024x128xf32>
    %c0_5 = arith.constant 0 : index
    %c0_6 = arith.constant 0 : index
    %6 = vector.load %arg5[%c0_5, %c0_6] : memref<1x128xf32, #tpu.memory_space<vmem>>, vector<1x128xf32>
    %7 = vector.broadcast %6 : vector<1x128xf32> to vector<1024x128xf32>
    %8 = arith.addf %5, %7 : vector<1024x128xf32>
    %cst_7 = arith.constant 0.000000e+00 : f32
    %9 = vector.broadcast %cst_7 : f32 to vector<1024x128xf32>
    %10 = arith.maximumf %8, %9 : vector<1024x128xf32>
    %11 = arith.truncf %10 : vector<1024x128xf32> to vector<1024x128xbf16>
    %c0_8 = arith.constant 0 : index
    %c0_9 = arith.constant 0 : index
    %12 = vector.load %arg6[%c0_8, %c0_9] : memref<1024x128xbf16, #tpu.memory_space<vmem>>, vector<1024x128xbf16>
    tpu.vector_store %arg6[%c0_8, %c0_9], %11 {strides = array<i32>} : memref<1024x128xbf16, #tpu.memory_space<vmem>>, vector<1024x128xbf16>,
    return
  }
  func.func @transform_0(%arg0: i32, %arg1: i32) -> (i32, i32) {
    %c0_i32 = arith.constant 0 : i32
    %c0_i32_0 = arith.constant 0 : i32
    return %arg0, %c0_i32 : i32, i32
  }
  func.func @transform_1(%arg0: i32, %arg1: i32) -> (i32, i32) {
    %c0_i32 = arith.constant 0 : i32
    %c0_i32_0 = arith.constant 0 : i32
    return %c0_i32, %arg1 : i32, i32
  }
  func.func @transform_2(%arg0: i32, %arg1: i32) -> (i32, i32) {
    %c0_i32 = arith.constant 0 : i32
    %c0_i32_0 = arith.constant 0 : i32
    return %c0_i32, %arg1 : i32, i32
  }
  func.func @transform_3(%arg0: i32, %arg1: i32) -> (i32, i32) {
    %c0_i32 = arith.constant 0 : i32
    %c0_i32_0 = arith.constant 0 : i32
    return %c0_i32, %arg1 : i32, i32
  }
  func.func @transform_4(%arg0: i32, %arg1: i32) -> (i32, i32) {
    %c0_i32 = arith.constant 0 : i32
    return %arg0, %arg1 : i32, i32
  }
}

</mosaic_0001>

<llo_original>
// kernel: _matmul_impl.1
$region0: #{_matmul_impl.1}
  #allocation0 [shape = 'u32[]', space=smem, size = 0x4, offset = 0x4, fixed_abs, tag = 'smem constant byte address 0x4 - core index']
  #allocation1 [shape = 'u32[144,128]{1,0:T(1,128)}', space=vmem, size = 0x12000, scoped, tag = 'internal scratch']
  %s0 = inlined_call_operand.vmem [shape: bf16[2048,152], index: 0, kind: input, shape index: {}]
  %s1 = inlined_call_operand.vmem [shape: bf16[152,128], index: 1, kind: input, shape index: {}]
  %s2 = inlined_call_operand.vmem [shape: f32[1,128], index: 2, kind: input, shape index: {}]
  %s3 = inlined_call_operand.vmem [shape: f32[1,128], index: 3, kind: input, shape index: {}]
  %s4 = inlined_call_operand.vmem [shape: bf16[2048,128], index: 4, kind: output, shape index: {}]
  %s5 = sld [smem:[#allocation0]]
  $region49: #{_matmul_impl.1} parent=0
    _
  %s7 = ssub.s32 1, %s5
  %s8 = scalar_select 0, %s7, %s5
  loop: start=0, step=1, limit=4
  $region2: #{_matmul_impl.1} parent=0 // loop_pre_header
    _
  $region3: #{_matmul_impl.1} parent=0 // loop_header
    %s10 = sphi 0, %s14
    %p11 = scmp.ge.s32.totalorder %s10, 4
    %s17 = sphi 0, %s29
    %s18 = sphi 0, %s25
    %s19 = sphi 0, %s17
    %s20 = sphi 0, %s18
    %s21 = sphi 0, %s19
    %s22 = sphi 0, %s20
    %s32 = sphi 0, %s34
    %s35 = sphi 0, %s32
    %s36 = sphi 0, %s35
    %s52 = sphi 0, %s36
    %s58 = sphi 0, %s60
    %s61 = sphi 0, %s58
    %s62 = sphi 0, %s61
    %s78 = sphi 0, %s62
    %s84 = sphi 0, %s86
    %s87 = sphi 0, %s84
    %s88 = sphi 0, %s87
    %s104 = sphi 0, %s88
    %s110 = sphi 0, %s112
    %s113 = sphi 0, %s110
    %s114 = sphi 0, %s113
    %s130 = sphi 0, %s114
    %s138 = sphi 0, %s140
    %s141 = sphi 0, %s138
    %s142 = sphi 0, %s141
    %s158 = sphi 0, %s142
  $region4: #{_matmul_impl.1} parent=0 // loop_header_branch
    %13 = sbr.rel (%p11) target = $region8
  $region5: #{_matmul_impl.1} parent=0 // loop_body
    %s15 = ssub.s32 %s10, 1
    %s16 = ssub.s32 %s10, 2
    %s23 = sadd.s32 1, %s18
    %p24 = scmp.ge.s32.totalorder %s23, 1
    %s25 = scalar_select %p24, 0, %s23
    %s26 = sadd.s32 1, %s17
    %s27 = scalar_select %p24, %s26, %s17
    %p28 = scmp.ge.s32.totalorder %s27, 2
    %s29 = scalar_select %p28, 0, %s27
    %s30 = ssub.s32 %s17, %s29
    %p31 = scmp.eq.s32.totalorder %s30, 0
    %s33 = sadd.s32 %s32, 1
    %s34 = scalar_select %p31, %s32, %s33
    %p37 = pneg %p31
    %p38 = scmp.eq.s32.totalorder %s10, 1
    %p39 = por %p37, %p38
    %p40 = scmp.ne.s32.totalorder %s32, %s35
    %p41 = scmp.eq.s32.totalorder %s10, 0
    %p42 = por %p40, %p41
    %p43 = scmp.ne.s32.totalorder %s32, %s35
    %p44 = scmp.eq.s32.totalorder %s15, 1
    %p45 = por %p43, %p44
    %p46 = scmp.ne.s32.totalorder %s35, %s36
    %p47 = scmp.eq.s32.totalorder %s15, 0
    %p48 = por %p46, %p47
    %p49 = scmp.ne.s32.totalorder %s35, %s36
    %p50 = scmp.eq.s32.totalorder %s16, 1
    %p51 = por %p49, %p50
    %p53 = scmp.ne.s32.totalorder %s36, %s52
    %p54 = scmp.eq.s32.totalorder %s16, 0
    %p55 = por %p53, %p54
    %s56 = ssub.s32 %s18, %s25
    %p57 = scmp.eq.s32.totalorder %s56, 0
    %s59 = sadd.s32 %s58, 1
    %s60 = scalar_select %p57, %s58, %s59
    %p63 = pneg %p57
    %p64 = scmp.eq.s32.totalorder %s10, 1
    %p65 = por %p63, %p64
    %p66 = scmp.ne.s32.totalorder %s58, %s61
    %p67 = scmp.eq.s32.totalorder %s10, 0
    %p68 = por %p66, %p67
    %p69 = scmp.ne.s32.totalorder %s58, %s61
    %p70 = scmp.eq.s32.totalorder %s15, 1
    %p71 = por %p69, %p70
    %p72 = scmp.ne.s32.totalorder %s61, %s62
    %p73 = scmp.eq.s32.totalorder %s15, 0
    %p74 = por %p72, %p73
    %p75 = scmp.ne.s32.totalorder %s61, %s62
    %p76 = scmp.eq.s32.totalorder %s16, 1
    %p77 = por %p75, %p76
    %p79 = scmp.ne.s32.totalorder %s62, %s78
    %p80 = scmp.eq.s32.totalorder %s16, 0
    %p81 = por %p79, %p80
    %s82 = ssub.s32 %s18, %s25
    %p83 = scmp.eq.s32.totalorder %s82, 0
    %s85 = sadd.s32 %s84, 1
    %s86 = scalar_select %p83, %s84, %s85
    %p89 = pneg %p83
    %p90 = scmp.eq.s32.totalorder %s10, 1
    %p91 = por %p89, %p90
    %p92 = scmp.ne.s32.totalorder %s84, %s87
    %p93 = scmp.eq.s32.totalorder %s10, 0
    %p94 = por %p92, %p93
    %p95 = scmp.ne.s32.totalorder %s84, %s87
    %p96 = scmp.eq.s32.totalorder %s15, 1
    %p97 = por %p95, %p96
    %p98 = scmp.ne.s32.totalorder %s87, %s88
    %p99 = scmp.eq.s32.totalorder %s15, 0
    %p100 = por %p98, %p99
    %p101 = scmp.ne.s32.totalorder %s87, %s88
    %p102 = scmp.eq.s32.totalorder %s16, 1
    %p103 = por %p101, %p102
    %p105 = scmp.ne.s32.totalorder %s88, %s104
    %p106 = scmp.eq.s32.totalorder %s16, 0
    %p107 = por %p105, %p106
    %s108 = ssub.s32 %s18, %s25
    %p109 = scmp.eq.s32.totalorder %s108, 0
    %s111 = sadd.s32 %s110, 1
    %s112 = scalar_select %p109, %s110, %s111
    %p115 = pneg %p109
    %p116 = scmp.eq.s32.totalorder %s10, 1
    %p117 = por %p115, %p116
    %p118 = scmp.ne.s32.totalorder %s110, %s113
    %p119 = scmp.eq.s32.totalorder %s10, 0
    %p120 = por %p118, %p119
    %p121 = scmp.ne.s32.totalorder %s110, %s113
    %p122 = scmp.eq.s32.totalorder %s15, 1
    %p123 = por %p121, %p122
    %p124 = scmp.ne.s32.totalorder %s113, %s114
    %p125 = scmp.eq.s32.totalorder %s15, 0
    %p126 = por %p124, %p125
    %p127 = scmp.ne.s32.totalorder %s113, %s114
    %p128 = scmp.eq.s32.totalorder %s16, 1
    %p129 = por %p127, %p128
    %p131 = scmp.ne.s32.totalorder %s114, %s130
    %p132 = scmp.eq.s32.totalorder %s16, 0
    %p133 = por %p131, %p132
    %s134 = ssub.s32 %s17, %s29
    %s135 = ssub.s32 %s18, %s25
    %s136 = sor.u32 %s134, %s135
    %p137 = scmp.eq.s32.totalorder %s136, 0
    %s139 = sadd.s32 %s138, 1
    %s140 = scalar_select %p137, %s138, %s139
    %p143 = pneg %p137
    %p144 = scmp.eq.s32.totalorder %s10, 1
    %p145 = por %p143, %p144
    %p146 = scmp.ne.s32.totalorder %s138, %s141
    %p147 = scmp.eq.s32.totalorder %s10, 0
    %p148 = por %p146, %p147
    %p149 = scmp.ne.s32.totalorder %s138, %s141
    %p150 = scmp.eq.s32.totalorder %s15, 1
    %p151 = por %p149, %p150
    %p152 = scmp.ne.s32.totalorder %s141, %s142
    %p153 = scmp.eq.s32.totalorder %s15, 0
    %p154 = por %p152, %p153
    %p155 = scmp.ne.s32.totalorder %s141, %s142
    %p156 = scmp.eq.s32.totalorder %s16, 1
    %p157 = por %p155, %p156
    %p159 = scmp.ne.s32.totalorder %s142, %s158
    %p160 = scmp.eq.s32.totalorder %s16, 0
    %p161 = por %p159, %p160
    %p162 = scmp.le.s32.totalorder 1, %s10
    %p163 = scmp.lt.s32.totalorder %s10, 3
    %p164 = pnand %p162, %p163
    %p165 = pneg %p164
    // Predicated region
    $region9: #{_matmul_impl.1} parent=5 // pred_check
      _
    $region10: #{_matmul_impl.1} parent=5 // pred_check_branch
      %167 = sbr.rel (%p164) target = $region12
    $region11: #{_matmul_impl.1} parent=5 // pred_region
      %s168 = ssub.s32 %s10, 1
      // Predicated region
      $region13: #{_matmul_impl.1} parent=11 // pred_check
        %p169 = pneg %p74
      $region14: #{_matmul_impl.1} parent=11 // pred_check_branch
        %171 = sbr.rel (%p169) target = $region16
      $region15: #{_matmul_impl.1} parent=11 // pred_region
        %p172 = scmp.lt.s32.totalorder %s20, 0
        %s173 = scalar_select %p172, %s20, 0
        %s174 = smul.addr %s173, 4
        %s175 = scalar_lea.vmem %s1, %s174
      $region16: #{_matmul_impl.1} parent=11 // pred_fallthru
        _
      // Predicated region
      $region17: #{_matmul_impl.1} parent=11 // pred_check
        %p176 = pneg %p100
      $region18: #{_matmul_impl.1} parent=11 // pred_check_branch
        %178 = sbr.rel (%p176) target = $region20
      $region19: #{_matmul_impl.1} parent=11 // pred_region
        %p179 = scmp.lt.s32.totalorder %s20, 0
        %s180 = scalar_select %p179, %s20, 0
        %s181 = scalar_lea.vmem %s2, %s180
      $region20: #{_matmul_impl.1} parent=11 // pred_fallthru
        _
      // Predicated region
      $region21: #{_matmul_impl.1} parent=11 // pred_check
        %p182 = pneg %p126
      $region22: #{_matmul_impl.1} parent=11 // pred_check_branch
        %184 = sbr.rel (%p182) target = $region24
      $region23: #{_matmul_impl.1} parent=11 // pred_region
        %p185 = scmp.lt.s32.totalorder %s20, 0
        %s186 = scalar_select %p185, %s20, 0
        %s187 = scalar_lea.vmem %s3, %s186
      $region24: #{_matmul_impl.1} parent=11 // pred_fallthru
        _
    $region12: #{_matmul_impl.1} parent=5 // pred_fallthru
      _
    %p188 = scmp.lt.s32.totalorder %s10, 2
    // Predicated region
    $region25: #{_matmul_impl.1} parent=5 // pred_check
      %p189 = pneg %p188
    $region26: #{_matmul_impl.1} parent=5 // pred_check_branch
      %191 = sbr.rel (%p189) target = $region28
    $region27: #{_matmul_impl.1} parent=5 // pred_region
      // Predicated region
      $region29: #{_matmul_impl.1} parent=27 // pred_check
        %p192 = pneg %p42
      $region30: #{_matmul_impl.1} parent=27 // pred_check_branch
        %194 = sbr.rel (%p192) target = $region32
      $region31: #{_matmul_impl.1} parent=27 // pred_region
        %s195 = smul.u32 128, %s17
        %p196 = scmp.lt.s32.totalorder %s195, 255
        %s197 = scalar_select %p196, %s195, 255
        %s198 = smul.addr %s197, 2
        %s199 = smul.addr %s198, 4
        %s200 = scalar_lea.vmem %s0, %s199
        %s201 = smul.u32 128, %s17
      $region32: #{_matmul_impl.1} parent=27 // pred_fallthru
        _
    $region28: #{_matmul_impl.1} parent=5 // pred_fallthru
      _
    %p202 = scmp.le.s32.totalorder 1, %s10
    %p203 = scmp.lt.s32.totalorder %s10, 3
    %p204 = pnand %p202, %p203
    %p205 = pneg %p204
    // Predicated region
    $region33: #{_matmul_impl.1} parent=5 // pred_check
      _
    $region34: #{_matmul_impl.1} parent=5 // pred_check_branch
      %207 = sbr.rel (%p204) target = $region36
    $region35: #{_matmul_impl.1} parent=5 // pred_region
      %s208 = ssub.s32 %s10, 1
      %s209 = smul.u32 128, %s19
      %p210 = scmp.lt.s32.totalorder %s209, 255
      %s211 = scalar_select %p210, %s209, 255
      %s212 = smul.addr %s211, 2
      %s213 = smul.addr %s212, 4
      %s214 = scalar_lea.vmem %s0, %s213
      %p215 = pneg %p48
      %p216 = pneg %p45
      %p217 = scmp.lt.s32.totalorder %s20, 0
      %s218 = scalar_select %p217, %s20, 0
      %s219 = smul.addr %s218, 4
      %s220 = scalar_lea.vmem %s1, %s219
      %p221 = pneg %p74
      %p222 = pneg %p71
      %p223 = scmp.lt.s32.totalorder %s20, 0
      %s224 = scalar_select %p223, %s20, 0
      %s225 = scalar_lea.vmem %s2, %s224
      %p226 = pneg %p100
      %p227 = pneg %p97
      %p228 = scmp.lt.s32.totalorder %s20, 0
      %s229 = scalar_select %p228, %s20, 0
      %s230 = scalar_lea.vmem %s3, %s229
      %p231 = pneg %p126
      %p232 = pneg %p123
      %p233 = pneg %p154
      %p234 = pneg %p151
      %s235 = smul.u32 128, %s19
      %p236 = scmp.lt.s32.totalorder %s235, 255
      %s237 = scalar_select %p236, %s235, 255
      %p238 = scmp.lt.s32.totalorder %s20, 0
      %s239 = scalar_select %p238, %s20, 0
      %s240 = sadd.s32 %s239, %s237
      %s241 = smul.addr %s240, 4
      %s242 = scalar_lea.vmem %s4, %s241
      %s243 = smul.u32 128, %s19
      %p244 = scmp.lt.s32.totalorder %s243, 255
      %s245 = scalar_select %p244, %s243, 255
      %s246 = smul.addr %s245, 2
      %s247 = smul.addr %s246, 4
      %s248 = scalar_lea.vmem %s0, %s247
      %s249 = smul.u32 128, %s19
      %p250 = scmp.lt.s32.totalorder %s20, 0
      %s251 = scalar_select %p250, %s20, 0
      %s252 = smul.addr %s251, 4
      %s253 = scalar_lea.vmem %s1, %s252
      %p254 = scmp.lt.s32.totalorder %s20, 0
      %s255 = scalar_select %p254, %s20, 0
      %s256 = scalar_lea.vmem %s2, %s255
      %p257 = scmp.lt.s32.totalorder %s20, 0
      %s258 = scalar_select %p257, %s20, 0
      %s259 = scalar_lea.vmem %s3, %s258
      %s260 = smul.u32 128, %s19
      %p261 = scmp.lt.s32.totalorder %s260, 255
      %s262 = scalar_select %p261, %s260, 255
      %p263 = scmp.lt.s32.totalorder %s20, 0
      %s264 = scalar_select %p263, %s20, 0
      %s265 = sadd.s32 %s264, %s262
      %s266 = smul.addr %s265, 4
      %s267 = scalar_lea.vmem %s4, %s266
      %s268 = smul.u32 128, %s19
      %v270 = vld [vmem:[%s248] sm:$0xff]
      %v271 = vld [vmem:[%s248 + $0x8] sm:$0xff]
      %v272 = vld [vmem:[%s248 + $0x10] sm:$0xff]
      %v273 = vld [vmem:[%s248 + $0x18] sm:$0xff]
      %v274 = vld [vmem:[%s248 + $0x20] sm:$0xff]
      %v275 = vld [vmem:[%s248 + $0x28] sm:$0xff]
      %v276 = vld [vmem:[%s248 + $0x30] sm:$0xff]
      %v277 = vld [vmem:[%s248 + $0x38] sm:$0xff]
      %v278 = vld [vmem:[%s248 + $0x40] sm:$0xff]
      %v279 = vld [vmem:[%s248 + $0x48] sm:$0xff]
      %v280 = vld [vmem:[%s248 + $0x50] sm:$0xff]
      %v281 = vld [vmem:[%s248 + $0x58] sm:$0xff]
      %v282 = vld [vmem:[%s248 + $0x60] sm:$0xff]
      %v283 = vld [vmem:[%s248 + $0x68] sm:$0xff]
      %v284 = vld [vmem:[%s248 + $0x70] sm:$0xff]
      %v285 = vld [vmem:[%s248 + $0x78] sm:$0xff]
      %v286 = vld [vmem:[%s248 + $0x80] sm:$0xff]
      %v287 = vld [vmem:[%s248 + $0x88] sm:$0xff]
      %v288 = vld [vmem:[%s248 + $0x90] sm:$0xff]
      %v289 = vld [vmem:[%s248 + $0x98] sm:$0xff]
      %v290 = vld [vmem:[%s248 + $0xa0] sm:$0xff]
      %v291 = vld [vmem:[%s248 + $0xa8] sm:$0xff]
      %v292 = vld [vmem:[%s248 + $0xb0] sm:$0xff]
      %v293 = vld [vmem:[%s248 + $0xb8] sm:$0xff]
      %v294 = vld [vmem:[%s248 + $0xc0] sm:$0xff]
      %v295 = vld [vmem:[%s248 + $0xc8] sm:$0xff]
      %v296 = vld [vmem:[%s248 + $0xd0] sm:$0xff]
      %v297 = vld [vmem:[%s248 + $0xd8] sm:$0xff]
      %v298 = vld [vmem:[%s248 + $0xe0] sm:$0xff]
      %v299 = vld [vmem:[%s248 + $0xe8] sm:$0xff]
      %v300 = vld [vmem:[%s248 + $0xf0] sm:$0xff]
      %v301 = vld [vmem:[%s248 + $0xf8] sm:$0xff]
      %v302 = vld [vmem:[%s248 + $0x100] sm:$0xff]
      %v303 = vld [vmem:[%s248 + $0x108] sm:$0xff]
      %v304 = vld [vmem:[%s248 + $0x110] sm:$0xff]
      %v305 = vld [vmem:[%s248 + $0x118] sm:$0xff]
      %v306 = vld [vmem:[%s248 + $0x120] sm:$0xff]
      %v307 = vld [vmem:[%s248 + $0x128] sm:$0xff]
      %v308 = vld [vmem:[%s248 + $0x130] sm:$0xff]
      %v309 = vld [vmem:[%s248 + $0x138] sm:$0xff]
      %v310 = vld [vmem:[%s248 + $0x140] sm:$0xff]
      %v311 = vld [vmem:[%s248 + $0x148] sm:$0xff]
      %v312 = vld [vmem:[%s248 + $0x150] sm:$0xff]
      %v313 = vld [vmem:[%s248 + $0x158] sm:$0xff]
      %v314 = vld [vmem:[%s248 + $0x160] sm:$0xff]
      %v315 = vld [vmem:[%s248 + $0x168] sm:$0xff]
      %v316 = vld [vmem:[%s248 + $0x170] sm:$0xff]
      %v317 = vld [vmem:[%s248 + $0x178] sm:$0xff]
      %v318 = vld [vmem:[%s248 + $0x180] sm:$0xff]
      %v319 = vld [vmem:[%s248 + $0x188] sm:$0xff]
      %v320 = vld [vmem:[%s248 + $0x190] sm:$0xff]
      %v321 = vld [vmem:[%s248 + $0x198] sm:$0xff]
      %v322 = vld [vmem:[%s248 + $0x1a0] sm:$0xff]
      %v323 = vld [vmem:[%s248 + $0x1a8] sm:$0xff]
      %v324 = vld [vmem:[%s248 + $0x1b0] sm:$0xff]
      %v325 = vld [vmem:[%s248 + $0x1b8] sm:$0xff]
      %v326 = vld [vmem:[%s248 + $0x1c0] sm:$0xff]
      %v327 = vld [vmem:[%s248 + $0x1c8] sm:$0xff]
      %v328 = vld [vmem:[%s248 + $0x1d0] sm:$0xff]
      %v329 = vld [vmem:[%s248 + $0x1d8] sm:$0xff]
      %v330 = vld [vmem:[%s248 + $0x1e0] sm:$0xff]
      %v331 = vld [vmem:[%s248 + $0x1e8] sm:$0xff]
      %v332 = vld [vmem:[%s248 + $0x1f0] sm:$0xff]
      %v333 = vld [vmem:[%s248 + $0x1f8] sm:$0xff]
      %v334 = vld [vmem:[%s248 + $0x200] sm:$0xff]
      %v335 = vld [vmem:[%s248 + $0x208] sm:$0xff]
      %v336 = vld [vmem:[%s248 + $0x210] sm:$0xff]
      %v337 = vld [vmem:[%s248 + $0x218] sm:$0xff]
      %v338 = vld [vmem:[%s248 + $0x220] sm:$0xff]
      %v339 = vld [vmem:[%s248 + $0x228] sm:$0xff]
      %v340 = vld [vmem:[%s248 + $0x230] sm:$0xff]
      %v341 = vld [vmem:[%s248 + $0x238] sm:$0xff]
      %v342 = vld [vmem:[%s248 + $0x240] sm:$0xff]
      %v343 = vld [vmem:[%s248 + $0x248] sm:$0xff]
      %v344 = vld [vmem:[%s248 + $0x250] sm:$0xff]
      %v345 = vld [vmem:[%s248 + $0x258] sm:$0xff]
      %v346 = vld [vmem:[%s248 + $0x260] sm:$0xff]
      %v347 = vld [vmem:[%s248 + $0x268] sm:$0xff]
      %v348 = vld [vmem:[%s248 + $0x270] sm:$0xff]
      %v349 = vld [vmem:[%s248 + $0x278] sm:$0xff]
      %v350 = vld [vmem:[%s248 + $0x280] sm:$0xff]
      %v351 = vld [vmem:[%s248 + $0x288] sm:$0xff]
      %v352 = vld [vmem:[%s248 + $0x290] sm:$0xff]
      %v353 = vld [vmem:[%s248 + $0x298] sm:$0xff]
      %v354 = vld [vmem:[%s248 + $0x2a0] sm:$0xff]
      %v355 = vld [vmem:[%s248 + $0x2a8] sm:$0xff]
      %v356 = vld [vmem:[%s248 + $0x2b0] sm:$0xff]
      %v357 = vld [vmem:[%s248 + $0x2b8] sm:$0xff]
      %v358 = vld [vmem:[%s248 + $0x2c0] sm:$0xff]
      %v359 = vld [vmem:[%s248 + $0x2c8] sm:$0xff]
      %v360 = vld [vmem:[%s248 + $0x2d0] sm:$0xff]
      %v361 = vld [vmem:[%s248 + $0x2d8] sm:$0xff]
      %v362 = vld [vmem:[%s248 + $0x2e0] sm:$0xff]
      %v363 = vld [vmem:[%s248 + $0x2e8] sm:$0xff]
      %v364 = vld [vmem:[%s248 + $0x2f0] sm:$0xff]
      %v365 = vld [vmem:[%s248 + $0x2f8] sm:$0xff]
      %v366 = vld [vmem:[%s248 + $0x300] sm:$0xff]
      %v367 = vld [vmem:[%s248 + $0x308] sm:$0xff]
      %v368 = vld [vmem:[%s248 + $0x310] sm:$0xff]
      %v369 = vld [vmem:[%s248 + $0x318] sm:$0xff]
      %v370 = vld [vmem:[%s248 + $0x320] sm:$0xff]
      %v371 = vld [vmem:[%s248 + $0x328] sm:$0xff]
      %v372 = vld [vmem:[%s248 + $0x330] sm:$0xff]
      %v373 = vld [vmem:[%s248 + $0x338] sm:$0xff]
      %v374 = vld [vmem:[%s248 + $0x340] sm:$0xff]
      %v375 = vld [vmem:[%s248 + $0x348] sm:$0xff]
      %v376 = vld [vmem:[%s248 + $0x350] sm:$0xff]
      %v377 = vld [vmem:[%s248 + $0x358] sm:$0xff]
      %v378 = vld [vmem:[%s248 + $0x360] sm:$0xff]
      %v379 = vld [vmem:[%s248 + $0x368] sm:$0xff]
      %v380 = vld [vmem:[%s248 + $0x370] sm:$0xff]
      %v381 = vld [vmem:[%s248 + $0x378] sm:$0xff]
      %v382 = vld [vmem:[%s248 + $0x380] sm:$0xff]
      %v383 = vld [vmem:[%s248 + $0x388] sm:$0xff]
      %v384 = vld [vmem:[%s248 + $0x390] sm:$0xff]
      %v385 = vld [vmem:[%s248 + $0x398] sm:$0xff]
      %v386 = vld [vmem:[%s248 + $0x3a0] sm:$0xff]
      %v387 = vld [vmem:[%s248 + $0x3a8] sm:$0xff]
      %v388 = vld [vmem:[%s248 + $0x3b0] sm:$0xff]
      %v389 = vld [vmem:[%s248 + $0x3b8] sm:$0xff]
      %v390 = vld [vmem:[%s248 + $0x3c0] sm:$0xff]
      %v391 = vld [vmem:[%s248 + $0x3c8] sm:$0xff]
      %v392 = vld [vmem:[%s248 + $0x3d0] sm:$0xff]
      %v393 = vld [vmem:[%s248 + $0x3d8] sm:$0xff]
      %v394 = vld [vmem:[%s248 + $0x3e0] sm:$0xff]
      %v395 = vld [vmem:[%s248 + $0x3e8] sm:$0xff]
      %v396 = vld [vmem:[%s248 + $0x3f0] sm:$0xff]
      %v397 = vld [vmem:[%s248 + $0x3f8] sm:$0xff]
      %v398 = vld [vmem:[%s253] sm:$0xf]
      %v399 = vld [vmem:[%s253 + $0x4] sm:$0xf]
      %v400 = vld [vmem:[%s253 + $0x8] sm:$0xf]
      %v401 = vld [vmem:[%s253 + $0xc] sm:$0xf]
      %v402 = vld [vmem:[%s253 + $0x10] sm:$0xf]
      %v403 = vld [vmem:[%s253 + $0x14] sm:$0xf]
      %v404 = vld [vmem:[%s253 + $0x18] sm:$0xf]
      %v405 = vld [vmem:[%s253 + $0x1c] sm:$0xf]
      %v406 = vld [vmem:[%s253 + $0x20] sm:$0xf]
      %v407 = vld [vmem:[%s253 + $0x24] sm:$0xf]
      %v408 = vld [vmem:[%s253 + $0x28] sm:$0xf]
      %v409 = vld [vmem:[%s253 + $0x2c] sm:$0xf]
      %v410 = vld [vmem:[%s253 + $0x30] sm:$0xf]
      %v411 = vld [vmem:[%s253 + $0x34] sm:$0xf]
      %v412 = vld [vmem:[%s253 + $0x38] sm:$0xf]
      %v413 = vld [vmem:[%s253 + $0x3c] sm:$0xf]
      %v414 = vld [vmem:[%s253 + $0x40] sm:$0xf]
      %v415 = vld [vmem:[%s253 + $0x44] sm:$0xf]
      %v416 = vld [vmem:[%s253 + $0x48] sm:$0xf]
      %v545 = vunpack.c.l.b16 %v270
      %v546 = vunpack.c.h.b16 %v270
      %v547 = vunpack.c.l.b16 %v271
      %v548 = vunpack.c.h.b16 %v271
      %v549 = vunpack.c.l.b16 %v272
      %v550 = vunpack.c.h.b16 %v272
      %v551 = vunpack.c.l.b16 %v273
      %v552 = vunpack.c.h.b16 %v273
      %v553 = vunpack.c.l.b16 %v274
      %v554 = vunpack.c.h.b16 %v274
      %v555 = vunpack.c.l.b16 %v275
      %v556 = vunpack.c.h.b16 %v275
      %v557 = vunpack.c.l.b16 %v276
      %v558 = vunpack.c.h.b16 %v276
      %v559 = vunpack.c.l.b16 %v277
      %v560 = vunpack.c.h.b16 %v277
      %v561 = vunpack.c.l.b16 %v278
      %v562 = vunpack.c.h.b16 %v278
      %v563 = vunpack.c.l.b16 %v279
      %v564 = vunpack.c.h.b16 %v279
      %v565 = vunpack.c.l.b16 %v280
      %v566 = vunpack.c.h.b16 %v280
      %v567 = vunpack.c.l.b16 %v281
      %v568 = vunpack.c.h.b16 %v281
      %v569 = vunpack.c.l.b16 %v282
      %v570 = vunpack.c.h.b16 %v282
      %v571 = vunpack.c.l.b16 %v283
      %v572 = vunpack.c.h.b16 %v283
      %v573 = vunpack.c.l.b16 %v284
      %v574 = vunpack.c.h.b16 %v284
      %v575 = vunpack.c.l.b16 %v285
      %v576 = vunpack.c.h.b16 %v285
      %v577 = vunpack.c.l.b16 %v286
      %v578 = vunpack.c.h.b16 %v286
      %v579 = vunpack.c.l.b16 %v287
      %v580 = vunpack.c.h.b16 %v287
      %v581 = vunpack.c.l.b16 %v288
      %v582 = vunpack.c.h.b16 %v288
      %v583 = vunpack.c.l.b16 %v289
      %v584 = vunpack.c.h.b16 %v289
      %v585 = vunpack.c.l.b16 %v290
      %v586 = vunpack.c.h.b16 %v290
      %v587 = vunpack.c.l.b16 %v291
      %v588 = vunpack.c.h.b16 %v291
      %v589 = vunpack.c.l.b16 %v292
      %v590 = vunpack.c.h.b16 %v292
      %v591 = vunpack.c.l.b16 %v293
      %v592 = vunpack.c.h.b16 %v293
      %v593 = vunpack.c.l.b16 %v294
      %v594 = vunpack.c.h.b16 %v294
      %v595 = vunpack.c.l.b16 %v295
      %v596 = vunpack.c.h.b16 %v295
      %v597 = vunpack.c.l.b16 %v296
      %v598 = vunpack.c.h.b16 %v296
      %v599 = vunpack.c.l.b16 %v297
      %v600 = vunpack.c.h.b16 %v297
      %v601 = vunpack.c.l.b16 %v298
      %v602 = vunpack.c.h.b16 %v298
      %v603 = vunpack.c.l.b16 %v299
      %v604 = vunpack.c.h.b16 %v299
      %v605 = vunpack.c.l.b16 %v300
      %v606 = vunpack.c.h.b16 %v300
      %v607 = vunpack.c.l.b16 %v301
      %v608 = vunpack.c.h.b16 %v301
      %v609 = vunpack.c.l.b16 %v302
      %v610 = vunpack.c.h.b16 %v302
      %v611 = vunpack.c.l.b16 %v303
      %v612 = vunpack.c.h.b16 %v303
      %v613 = vunpack.c.l.b16 %v304
      %v614 = vunpack.c.h.b16 %v304
      %v615 = vunpack.c.l.b16 %v305
      %v616 = vunpack.c.h.b16 %v305
      %v617 = vunpack.c.l.b16 %v306
      %v618 = vunpack.c.h.b16 %v306
      %v619 = vunpack.c.l.b16 %v307
      %v620 = vunpack.c.h.b16 %v307
      %v621 = vunpack.c.l.b16 %v308
      %v622 = vunpack.c.h.b16 %v308
      %v623 = vunpack.c.l.b16 %v309
      %v624 = vunpack.c.h.b16 %v309
      %v625 = vunpack.c.l.b16 %v310
      %v626 = vunpack.c.h.b16 %v310
      %v627 = vunpack.c.l.b16 %v311
      %v628 = vunpack.c.h.b16 %v311
      %v629 = vunpack.c.l.b16 %v312
      %v630 = vunpack.c.h.b16 %v312
      %v631 = vunpack.c.l.b16 %v313
      %v632 = vunpack.c.h.b16 %v313
      %v633 = vunpack.c.l.b16 %v314
      %v634 = vunpack.c.h.b16 %v314
      %v635 = vunpack.c.l.b16 %v315
      %v636 = vunpack.c.h.b16 %v315
      %v637 = vunpack.c.l.b16 %v316
      %v638 = vunpack.c.h.b16 %v316
      %v639 = vunpack.c.l.b16 %v317
      %v640 = vunpack.c.h.b16 %v317
      %v641 = vunpack.c.l.b16 %v318
      %v642 = vunpack.c.h.b16 %v318
      %v643 = vunpack.c.l.b16 %v319
      %v644 = vunpack.c.h.b16 %v319
      %v645 = vunpack.c.l.b16 %v320
      %v646 = vunpack.c.h.b16 %v320
      %v647 = vunpack.c.l.b16 %v321
      %v648 = vunpack.c.h.b16 %v321
      %v649 = vunpack.c.l.b16 %v322
      %v650 = vunpack.c.h.b16 %v322
      %v651 = vunpack.c.l.b16 %v323
      %v652 = vunpack.c.h.b16 %v323
      %v653 = vunpack.c.l.b16 %v324
      %v654 = vunpack.c.h.b16 %v324
      %v655 = vunpack.c.l.b16 %v325
      %v656 = vunpack.c.h.b16 %v325
      %v657 = vunpack.c.l.b16 %v326
      %v658 = vunpack.c.h.b16 %v326
      %v659 = vunpack.c.l.b16 %v327
      %v660 = vunpack.c.h.b16 %v327
      %v661 = vunpack.c.l.b16 %v328
      %v662 = vunpack.c.h.b16 %v328
      %v663 = vunpack.c.l.b16 %v329
      %v664 = vunpack.c.h.b16 %v329
      %v665 = vunpack.c.l.b16 %v330
      %v666 = vunpack.c.h.b16 %v330
      %v667 = vunpack.c.l.b16 %v331
      %v668 = vunpack.c.h.b16 %v331
      %v669 = vunpack.c.l.b16 %v332
      %v670 = vunpack.c.h.b16 %v332
      %v671 = vunpack.c.l.b16 %v333
      %v672 = vunpack.c.h.b16 %v333
      %v673 = vunpack.c.l.b16 %v334
      %v674 = vunpack.c.h.b16 %v334
      %v675 = vunpack.c.l.b16 %v335
      %v676 = vunpack.c.h.b16 %v335
      %v677 = vunpack.c.l.b16 %v336
      %v678 = vunpack.c.h.b16 %v336
      %v679 = vunpack.c.l.b16 %v337
      %v680 = vunpack.c.h.b16 %v337
      %v681 = vunpack.c.l.b16 %v338
      %v682 = vunpack.c.h.b16 %v338
      %v683 = vunpack.c.l.b16 %v339
      %v684 = vunpack.c.h.b16 %v339
      %v685 = vunpack.c.l.b16 %v340
      %v686 = vunpack.c.h.b16 %v340
      %v687 = vunpack.c.l.b16 %v341
      %v688 = vunpack.c.h.b16 %v341
      %v689 = vunpack.c.l.b16 %v342
      %v690 = vunpack.c.h.b16 %v342
      %v691 = vunpack.c.l.b16 %v343
      %v692 = vunpack.c.h.b16 %v343
      %v693 = vunpack.c.l.b16 %v344
      %v694 = vunpack.c.h.b16 %v344
      %v695 = vunpack.c.l.b16 %v345
      %v696 = vunpack.c.h.b16 %v345
      %v697 = vunpack.c.l.b16 %v346
      %v698 = vunpack.c.h.b16 %v346
      %v699 = vunpack.c.l.b16 %v347
      %v700 = vunpack.c.h.b16 %v347
      %v701 = vunpack.c.l.b16 %v348
      %v702 = vunpack.c.h.b16 %v348
      %v703 = vunpack.c.l.b16 %v349
      %v704 = vunpack.c.h.b16 %v349
      %v705 = vunpack.c.l.b16 %v350
      %v706 = vunpack.c.h.b16 %v350
      %v707 = vunpack.c.l.b16 %v351
      %v708 = vunpack.c.h.b16 %v351
      %v709 = vunpack.c.l.b16 %v352
      %v710 = vunpack.c.h.b16 %v352
      %v711 = vunpack.c.l.b16 %v353
      %v712 = vunpack.c.h.b16 %v353
      %v713 = vunpack.c.l.b16 %v354
      %v714 = vunpack.c.h.b16 %v354
      %v715 = vunpack.c.l.b16 %v355
      %v716 = vunpack.c.h.b16 %v355
      %v717 = vunpack.c.l.b16 %v356
      %v718 = vunpack.c.h.b16 %v356
      %v719 = vunpack.c.l.b16 %v357
      %v720 = vunpack.c.h.b16 %v357
      %v721 = vunpack.c.l.b16 %v358
      %v722 = vunpack.c.h.b16 %v358
      %v723 = vunpack.c.l.b16 %v359
      %v724 = vunpack.c.h.b16 %v359
      %v725 = vunpack.c.l.b16 %v360
      %v726 = vunpack.c.h.b16 %v360
      %v727 = vunpack.c.l.b16 %v361
      %v728 = vunpack.c.h.b16 %v361
      %v729 = vunpack.c.l.b16 %v362
      %v730 = vunpack.c.h.b16 %v362
      %v731 = vunpack.c.l.b16 %v363
      %v732 = vunpack.c.h.b16 %v363
      %v733 = vunpack.c.l.b16 %v364
      %v734 = vunpack.c.h.b16 %v364
      %v735 = vunpack.c.l.b16 %v365
      %v736 = vunpack.c.h.b16 %v365
      %v737 = vunpack.c.l.b16 %v366
      %v738 = vunpack.c.h.b16 %v366
      %v739 = vunpack.c.l.b16 %v367
      %v740 = vunpack.c.h.b16 %v367
      %v741 = vunpack.c.l.b16 %v368
      %v742 = vunpack.c.h.b16 %v368
      %v743 = vunpack.c.l.b16 %v369
      %v744 = vunpack.c.h.b16 %v369
      %v745 = vunpack.c.l.b16 %v370
      %v746 = vunpack.c.h.b16 %v370
      %v747 = vunpack.c.l.b16 %v371
      %v748 = vunpack.c.h.b16 %v371
      %v749 = vunpack.c.l.b16 %v372
      %v750 = vunpack.c.h.b16 %v372
      %v751 = vunpack.c.l.b16 %v373
      %v752 = vunpack.c.h.b16 %v373
      %v753 = vunpack.c.l.b16 %v374
      %v754 = vunpack.c.h.b16 %v374
      %v755 = vunpack.c.l.b16 %v375
      %v756 = vunpack.c.h.b16 %v375
      %v757 = vunpack.c.l.b16 %v376
      %v758 = vunpack.c.h.b16 %v376
      %v759 = vunpack.c.l.b16 %v377
      %v760 = vunpack.c.h.b16 %v377
      %v761 = vunpack.c.l.b16 %v378
      %v762 = vunpack.c.h.b16 %v378
      %v763 = vunpack.c.l.b16 %v379
      %v764 = vunpack.c.h.b16 %v379
      %v765 = vunpack.c.l.b16 %v380
      %v766 = vunpack.c.h.b16 %v380
      %v767 = vunpack.c.l.b16 %v381
      %v768 = vunpack.c.h.b16 %v381
      %v769 = vunpack.c.l.b16 %v382
      %v770 = vunpack.c.h.b16 %v382
      %v771 = vunpack.c.l.b16 %v383
      %v772 = vunpack.c.h.b16 %v383
      %v773 = vunpack.c.l.b16 %v384
      %v774 = vunpack.c.h.b16 %v384
      %v775 = vunpack.c.l.b16 %v385
      %v776 = vunpack.c.h.b16 %v385
      %v777 = vunpack.c.l.b16 %v386
      %v778 = vunpack.c.h.b16 %v386
      %v779 = vunpack.c.l.b16 %v387
      %v780 = vunpack.c.h.b16 %v387
      %v781 = vunpack.c.l.b16 %v388
      %v782 = vunpack.c.h.b16 %v388
      %v783 = vunpack.c.l.b16 %v389
      %v784 = vunpack.c.h.b16 %v389
      %v785 = vunpack.c.l.b16 %v390
      %v786 = vunpack.c.h.b16 %v390
      %v787 = vunpack.c.l.b16 %v391
      %v788 = vunpack.c.h.b16 %v391
      %v789 = vunpack.c.l.b16 %v392
      %v790 = vunpack.c.h.b16 %v392
      %v791 = vunpack.c.l.b16 %v393
      %v792 = vunpack.c.h.b16 %v393
      %v793 = vunpack.c.l.b16 %v394
      %v794 = vunpack.c.h.b16 %v394
      %v795 = vunpack.c.l.b16 %v395
      %v796 = vunpack.c.h.b16 %v395
      %v797 = vunpack.c.l.b16 %v396
      %v798 = vunpack.c.h.b16 %v396
      %v799 = vunpack.c.l.b16 %v397
      %v800 = vunpack.c.h.b16 %v397
      %v801 = vpack.c.b16 %v547, %v545
      %v802 = vpack.c.b16 %v548, %v546
      %v803 = vpack.c.b16 %v551, %v549
      %v804 = vpack.c.b16 %v552, %v550
      %v805 = vpack.c.b16 %v555, %v553
      %v806 = vpack.c.b16 %v556, %v554
      %v807 = vpack.c.b16 %v559, %v557
      %v808 = vpack.c.b16 %v560, %v558
      %v809 = vpack.c.b16 %v563, %v561
      %v810 = vpack.c.b16 %v564, %v562
      %v811 = vpack.c.b16 %v567, %v565
      %v812 = vpack.c.b16 %v568, %v566
      %v813 = vpack.c.b16 %v571, %v569
      %v814 = vpack.c.b16 %v572, %v570
      %v815 = vpack.c.b16 %v575, %v573
      %v816 = vpack.c.b16 %v576, %v574
      %v817 = vpack.c.b16 %v579, %v577
      %v818 = vpack.c.b16 %v580, %v578
      %v819 = vpack.c.b16 %v583, %v581
      %v820 = vpack.c.b16 %v584, %v582
      %v821 = vpack.c.b16 %v587, %v585
      %v822 = vpack.c.b16 %v588, %v586
      %v823 = vpack.c.b16 %v591, %v589
      %v824 = vpack.c.b16 %v592, %v590
      %v825 = vpack.c.b16 %v595, %v593
      %v826 = vpack.c.b16 %v596, %v594
      %v827 = vpack.c.b16 %v599, %v597
      %v828 = vpack.c.b16 %v600, %v598
      %v829 = vpack.c.b16 %v603, %v601
      %v830 = vpack.c.b16 %v604, %v602
      %v831 = vpack.c.b16 %v607, %v605
      %v832 = vpack.c.b16 %v608, %v606
      %v833 = vpack.c.b16 %v611, %v609
      %v834 = vpack.c.b16 %v612, %v610
      %v835 = vpack.c.b16 %v615, %v613
      %v836 = vpack.c.b16 %v616, %v614
      %v837 = vpack.c.b16 %v619, %v617
      %v838 = vpack.c.b16 %v620, %v618
      %v839 = vpack.c.b16 %v623, %v621
      %v840 = vpack.c.b16 %v624, %v622
      %v841 = vpack.c.b16 %v627, %v625
      %v842 = vpack.c.b16 %v628, %v626
      %v843 = vpack.c.b16 %v631, %v629
      %v844 = vpack.c.b16 %v632, %v630
      %v845 = vpack.c.b16 %v635, %v633
      %v846 = vpack.c.b16 %v636, %v634
      %v847 = vpack.c.b16 %v639, %v637
      %v848 = vpack.c.b16 %v640, %v638
      %v849 = vpack.c.b16 %v643, %v641
      %v850 = vpack.c.b16 %v644, %v642
      %v851 = vpack.c.b16 %v647, %v645
      %v852 = vpack.c.b16 %v648, %v646
      %v853 = vpack.c.b16 %v651, %v649
      %v854 = vpack.c.b16 %v652, %v650
      %v855 = vpack.c.b16 %v655, %v653
      %v856 = vpack.c.b16 %v656, %v654
      %v857 = vpack.c.b16 %v659, %v657
      %v858 = vpack.c.b16 %v660, %v658
      %v859 = vpack.c.b16 %v663, %v661
      %v860 = vpack.c.b16 %v664, %v662
      %v861 = vpack.c.b16 %v667, %v665
      %v862 = vpack.c.b16 %v668, %v666
      %v863 = vpack.c.b16 %v671, %v669
      %v864 = vpack.c.b16 %v672, %v670
      %v865 = vpack.c.b16 %v675, %v673
      %v866 = vpack.c.b16 %v676, %v674
      %v867 = vpack.c.b16 %v679, %v677
      %v868 = vpack.c.b16 %v680, %v678
      %v869 = vpack.c.b16 %v683, %v681
      %v870 = vpack.c.b16 %v684, %v682
      %v871 = vpack.c.b16 %v687, %v685
      %v872 = vpack.c.b16 %v688, %v686
      %v873 = vpack.c.b16 %v691, %v689
      %v874 = vpack.c.b16 %v692, %v690
      %v875 = vpack.c.b16 %v695, %v693
      %v876 = vpack.c.b16 %v696, %v694
      %v877 = vpack.c.b16 %v699, %v697
      %v878 = vpack.c.b16 %v700, %v698
      %v879 = vpack.c.b16 %v703, %v701
      %v880 = vpack.c.b16 %v704, %v702
      %v881 = vpack.c.b16 %v707, %v705
      %v882 = vpack.c.b16 %v708, %v706
      %v883 = vpack.c.b16 %v711, %v709
      %v884 = vpack.c.b16 %v712, %v710
      %v885 = vpack.c.b16 %v715, %v713
      %v886 = vpack.c.b16 %v716, %v714
      %v887 = vpack.c.b16 %v719, %v717
      %v888 = vpack.c.b16 %v720, %v718
      %v889 = vpack.c.b16 %v723, %v721
      %v890 = vpack.c.b16 %v724, %v722
      %v891 = vpack.c.b16 %v727, %v725
      %v892 = vpack.c.b16 %v728, %v726
      %v893 = vpack.c.b16 %v731, %v729
      %v894 = vpack.c.b16 %v732, %v730
      %v895 = vpack.c.b16 %v735, %v733
      %v896 = vpack.c.b16 %v736, %v734
      %v897 = vpack.c.b16 %v739, %v737
      %v898 = vpack.c.b16 %v740, %v738
      %v899 = vpack.c.b16 %v743, %v741
      %v900 = vpack.c.b16 %v744, %v742
      %v901 = vpack.c.b16 %v747, %v745
      %v902 = vpack.c.b16 %v748, %v746
      %v903 = vpack.c.b16 %v751, %v749
      %v904 = vpack.c.b16 %v752, %v750
      %v905 = vpack.c.b16 %v755, %v753
      %v906 = vpack.c.b16 %v756, %v754
      %v907 = vpack.c.b16 %v759, %v757
      %v908 = vpack.c.b16 %v760, %v758
      %v909 = vpack.c.b16 %v763, %v761
      %v910 = vpack.c.b16 %v764, %v762
      %v911 = vpack.c.b16 %v767, %v765
      %v912 = vpack.c.b16 %v768, %v766
      %v913 = vpack.c.b16 %v771, %v769
      %v914 = vpack.c.b16 %v772, %v770
      %v915 = vpack.c.b16 %v775, %v773
      %v916 = vpack.c.b16 %v776, %v774
      %v917 = vpack.c.b16 %v779, %v777
      %v918 = vpack.c.b16 %v780, %v778
      %v919 = vpack.c.b16 %v783, %v781
      %v920 = vpack.c.b16 %v784, %v782
      %v921 = vpack.c.b16 %v787, %v785
      %v922 = vpack.c.b16 %v788, %v786
      %v923 = vpack.c.b16 %v791, %v789
      %v924 = vpack.c.b16 %v792, %v790
      %v925 = vpack.c.b16 %v795, %v793
      %v926 = vpack.c.b16 %v796, %v794
      %v927 = vpack.c.b16 %v799, %v797
      %v928 = vpack.c.b16 %v800, %v798
      %v1012 = vunpack.c.l.b16 %v398
      %v1013 = vunpack.c.l.b16 %v399
      %v1014 = vunpack.c.l.b16 %v400
      %v1015 = vunpack.c.l.b16 %v401
      %v1016 = vunpack.c.l.b16 %v402
      %v1017 = vunpack.c.l.b16 %v403
      %v1018 = vunpack.c.l.b16 %v404
      %v1019 = vunpack.c.l.b16 %v405
      %v1020 = vunpack.c.l.b16 %v406
      %v1021 = vunpack.c.l.b16 %v407
      %v1022 = vunpack.c.l.b16 %v408
      %v1023 = vunpack.c.l.b16 %v409
      %v1024 = vunpack.c.l.b16 %v410
      %v1025 = vunpack.c.l.b16 %v411
      %v1026 = vunpack.c.l.b16 %v412
      %v1027 = vunpack.c.l.b16 %v413
      %v1028 = vunpack.c.l.b16 %v414
      %v1029 = vunpack.c.l.b16 %v415
      %v1030 = vunpack.c.l.b16 %v416
      %v1031 = vpack.c.b16 %v1013, %v1012
      %v1032 = vpack.c.b16 %v1015, %v1014
      %v1033 = vpack.c.b16 %v1017, %v1016
      %v1034 = vpack.c.b16 %v1019, %v1018
      %v1035 = vpack.c.b16 %v1021, %v1020
      %v1036 = vpack.c.b16 %v1023, %v1022
      %v1037 = vpack.c.b16 %v1025, %v1024
      %v1038 = vpack.c.b16 %v1027, %v1026
      %v1039 = vpack.c.b16 %v1029, %v1028
      %v1040 = vpack.c.b16 %v1030, %v1030
      %vm1050 = vcmask 195584
      %v1052 = vsel %vm1050, %v802, 0
      %v1055 = vsel %vm1050, %v804, 0
      %v1058 = vsel %vm1050, %v806, 0
      %v1061 = vsel %vm1050, %v808, 0
      %v1064 = vsel %vm1050, %v810, 0
      %v1067 = vsel %vm1050, %v812, 0
      %v1070 = vsel %vm1050, %v814, 0
      %v1073 = vsel %vm1050, %v816, 0
      %v1076 = vsel %vm1050, %v818, 0
      %v1079 = vsel %vm1050, %v820, 0
      %v1082 = vsel %vm1050, %v822, 0
      %v1085 = vsel %vm1050, %v824, 0
      %v1088 = vsel %vm1050, %v826, 0
      %v1091 = vsel %vm1050, %v828, 0
      %v1094 = vsel %vm1050, %v830, 0
      %v1097 = vsel %vm1050, %v832, 0
      %v1100 = vsel %vm1050, %v834, 0
      %v1103 = vsel %vm1050, %v836, 0
      %v1106 = vsel %vm1050, %v838, 0
      %v1109 = vsel %vm1050, %v840, 0
      %v1112 = vsel %vm1050, %v842, 0
      %v1115 = vsel %vm1050, %v844, 0
      %v1118 = vsel %vm1050, %v846, 0
      %v1121 = vsel %vm1050, %v848, 0
      %v1124 = vsel %vm1050, %v850, 0
      %v1127 = vsel %vm1050, %v852, 0
      %v1130 = vsel %vm1050, %v854, 0
      %v1133 = vsel %vm1050, %v856, 0
      %v1136 = vsel %vm1050, %v858, 0
      %v1139 = vsel %vm1050, %v860, 0
      %v1142 = vsel %vm1050, %v862, 0
      %v1145 = vsel %vm1050, %v864, 0
      %v1148 = vsel %vm1050, %v866, 0
      %v1151 = vsel %vm1050, %v868, 0
      %v1154 = vsel %vm1050, %v870, 0
      %v1157 = vsel %vm1050, %v872, 0
      %v1160 = vsel %vm1050, %v874, 0
      %v1163 = vsel %vm1050, %v876, 0
      %v1166 = vsel %vm1050, %v878, 0
      %v1169 = vsel %vm1050, %v880, 0
      %v1172 = vsel %vm1050, %v882, 0
      %v1175 = vsel %vm1050, %v884, 0
      %v1178 = vsel %vm1050, %v886, 0
      %v1181 = vsel %vm1050, %v888, 0
      %v1184 = vsel %vm1050, %v890, 0
      %v1187 = vsel %vm1050, %v892, 0
      %v1190 = vsel %vm1050, %v894, 0
      %v1193 = vsel %vm1050, %v896, 0
      %v1196 = vsel %vm1050, %v898, 0
      %v1199 = vsel %vm1050, %v900, 0
      %v1202 = vsel %vm1050, %v902, 0
      %v1205 = vsel %vm1050, %v904, 0
      %v1208 = vsel %vm1050, %v906, 0
      %v1211 = vsel %vm1050, %v908, 0
      %v1214 = vsel %vm1050, %v910, 0
      %v1217 = vsel %vm1050, %v912, 0
      %v1220 = vsel %vm1050, %v914, 0
      %v1223 = vsel %vm1050, %v916, 0
      %v1226 = vsel %vm1050, %v918, 0
      %v1229 = vsel %vm1050, %v920, 0
      %v1232 = vsel %vm1050, %v922, 0
      %v1235 = vsel %vm1050, %v924, 0
      %v1238 = vsel %vm1050, %v926, 0
      %v1241 = vsel %vm1050, %v928, 0
      %vm1243 = vcmask 1043456
      %v1245 = vsel %vm1243, %v1040, 0
      %1247 = vmatprep.subr.bf16.mxu0 0
      %1248 = vmatpush1.bf16.msra.mxu0 %v1031
      %1249 = vmatprep.subr.bf16.mxu0 0
      %1250 = vmatpush1.bf16.msra.mxu0 %v1032
      %1251 = vmatprep.subr.bf16.mxu0 0
      %1252 = vmatpush1.bf16.msra.mxu0 %v1033
      %1253 = vmatprep.subr.bf16.mxu0 0
      %1254 = vmatpush1.bf16.msra.mxu0 %v1034
      %1255 = vmatprep.subr.bf16.mxu0 0
      %1256 = vmatpush1.bf16.msra.mxu0 %v1035
      %1257 = vmatprep.subr.bf16.mxu0 0
      %1258 = vmatpush1.bf16.msra.mxu0 %v1036
      %1259 = vmatprep.subr.bf16.mxu0 0
      %1260 = vmatpush1.bf16.msra.mxu0 %v1037
      %1261 = vmatprep.subr.bf16.mxu0 0
      %1262 = vmatpush1.bf16.msra.mxu0 %v1038
      %1263 = vmatprep.subr.bf16.mxu0 0
      %1264 = vmatpush1.bf16.msra.mxu0 %v1039
      %1265 = vmatprep.subr.bf16.mxu0 0
      %1266 = vmatpush1.bf16.msra.mxu0 %v1245
      %1267 = vmatprep.subr.bf16.mxu0 0
      %1268 = vmatpush1.bf16.msra.mxu0 0
      %1269 = vmatprep.subr.bf16.mxu0 0
      %1270 = vmatpush1.bf16.msra.mxu0 0
      %1271 = vmatprep.subr.bf16.mxu0 0
      %1272 = vmatpush1.bf16.msra.mxu0 0
      %1273 = vmatprep.subr.bf16.mxu0 0
      %1274 = vmatpush1.bf16.msra.mxu0 0
      %1275 = vmatprep.subr.bf16.mxu0 0
      %1276 = vmatpush1.bf16.msra.mxu0 0
      %1277 = vmatprep.subr.bf16.mxu0 0
      %1278 = vmatpush1.bf16.msra.mxu0 0
      %1279 = vmatprep.mubr.bf16.mxu0 %v1052
      %1280 = vmatmul.mubr.bf16.gmra.mrb[0].mxu0 %v801
      %v1281 = vpop.f32.mrb[0].mxu0
      %v1282 = vadd.f32 0.0, %v1281
      %v1283 = vpop.f32.mrb[0].mxu0
      %v1284 = vpop.f32.mrb[0].mxu0
      %v1285 = vadd.f32 0.0, %v1284
      %v1286 = vpop.f32.mrb[0].mxu0
      %1287 = vmatprep.mubr.bf16.mxu0 %v1055
      %1288 = vmatmul.mubr.bf16.gmra.mrb[0].mxu0 %v803
      %v1289 = vpop.f32.mrb[0].mxu0
      %v1290 = vadd.f32 0.0, %v1289
      %v1291 = vpop.f32.mrb[0].mxu0
      %v1292 = vpop.f32.mrb[0].mxu0
      %v1293 = vadd.f32 0.0, %v1292
      %v1294 = vpop.f32.mrb[0].mxu0
      %1295 = vmatprep.mubr.bf16.mxu0 %v1058
      %1296 = vmatmul.mubr.bf16.gmra.mrb[0].mxu0 %v805
      %v1297 = vpop.f32.mrb[0].mxu0
      %v1298 = vadd.f32 0.0, %v1297
      %v1299 = vpop.f32.mrb[0].mxu0
      %v1300 = vpop.f32.mrb[0].mxu0
      %v1301 = vadd.f32 0.0, %v1300
      %v1302 = vpop.f32.mrb[0].mxu0
      %1303 = vmatprep.mubr.bf16.mxu0 %v1061
      %1304 = vmatmul.mubr.bf16.gmra.mrb[0].mxu0 %v807
      %v1305 = vpop.f32.mrb[0].mxu0
      %v1306 = vadd.f32 0.0, %v1305
      %v1307 = vpop.f32.mrb[0].mxu0
      %v1308 = vpop.f32.mrb[0].mxu0
      %v1309 = vadd.f32 0.0, %v1308
      %v1310 = vpop.f32.mrb[0].mxu0
      %1311 = vmatprep.mubr.bf16.mxu0 %v1064
      %1312 = vmatmul.mubr.bf16.gmra.mrb[0].mxu0 %v809
      %v1313 = vpop.f32.mrb[0].mxu0
      %v1314 = vadd.f32 0.0, %v1313
      %v1315 = vpop.f32.mrb[0].mxu0
      %v1316 = vpop.f32.mrb[0].mxu0
      %v1317 = vadd.f32 0.0, %v1316
      %v1318 = vpop.f32.mrb[0].mxu0
      %1319 = vmatprep.mubr.bf16.mxu0 %v1067
      %1320 = vmatmul.mubr.bf16.gmra.mrb[0].mxu0 %v811
      %v1321 = vpop.f32.mrb[0].mxu0
      %v1322 = vadd.f32 0.0, %v1321
      %v1323 = vpop.f32.mrb[0].mxu0
      %v1324 = vpop.f32.mrb[0].mxu0
      %v1325 = vadd.f32 0.0, %v1324
      %v1326 = vpop.f32.mrb[0].mxu0
      %1327 = vmatprep.mubr.bf16.mxu0 %v1070
      %1328 = vmatmul.mubr.bf16.gmra.mrb[0].mxu0 %v813
      %v1329 = vpop.f32.mrb[0].mxu0
      %v1330 = vadd.f32 0.0, %v1329
      %v1331 = vpop.f32.mrb[0].mxu0
      %v1332 = vpop.f32.mrb[0].mxu0
      %v1333 = vadd.f32 0.0, %v1332
      %v1334 = vpop.f32.mrb[0].mxu0
      %1335 = vmatprep.mubr.bf16.mxu0 %v1073
      %1336 = vmatmul.mubr.bf16.gmra.mrb[0].mxu0 %v815
      %v1337 = vpop.f32.mrb[0].mxu0
      %v1338 = vadd.f32 0.0, %v1337
      %v1339 = vpop.f32.mrb[0].mxu0
      %v1340 = vpop.f32.mrb[0].mxu0
      %v1341 = vadd.f32 0.0, %v1340
      %v1342 = vpop.f32.mrb[0].mxu0
      %1343 = vmatprep.mubr.bf16.mxu0 %v1076
      %1344 = vmatmul.mubr.bf16.gmra.mrb[0].mxu0 %v817
      %v1345 = vpop.f32.mrb[0].mxu0
      %v1346 = vadd.f32 0.0, %v1345
      %v1347 = vpop.f32.mrb[0].mxu0
      %v1348 = vpop.f32.mrb[0].mxu0
      %v1349 = vadd.f32 0.0, %v1348
      %v1350 = vpop.f32.mrb[0].mxu0
      %1351 = vmatprep.mubr.bf16.mxu0 %v1079
      %1352 = vmatmul.mubr.bf16.gmra.mrb[0].mxu0 %v819
      %v1353 = vpop.f32.mrb[0].mxu0
      %v1354 = vadd.f32 0.0, %v1353
      %v1355 = vpop.f32.mrb[0].mxu0
      %v1356 = vpop.f32.mrb[0].mxu0
      %v1357 = vadd.f32 0.0, %v1356
      %v1358 = vpop.f32.mrb[0].mxu0
      %1359 = vmatprep.mubr.bf16.mxu0 %v1082
      %1360 = vmatmul.mubr.bf16.gmra.mrb[0].mxu0 %v821
      %v1361 = vpop.f32.mrb[0].mxu0
      %v1362 = vadd.f32 0.0, %v1361
      %v1363 = vpop.f32.mrb[0].mxu0
      %v1364 = vpop.f32.mrb[0].mxu0
      %v1365 = vadd.f32 0.0, %v1364
      %v1366 = vpop.f32.mrb[0].mxu0
      %1367 = vmatprep.mubr.bf16.mxu0 %v1085
      %1368 = vmatmul.mubr.bf16.gmra.mrb[0].mxu0 %v823
      %v1369 = vpop.f32.mrb[0].mxu0
      %v1370 = vadd.f32 0.0, %v1369
      %v1371 = vpop.f32.mrb[0].mxu0
      %v1372 = vpop.f32.mrb[0].mxu0
      %v1373 = vadd.f32 0.0, %v1372
      %v1374 = vpop.f32.mrb[0].mxu0
      %1375 = vmatprep.mubr.bf16.mxu0 %v1088
      %1376 = vmatmul.mubr.bf16.gmra.mrb[0].mxu0 %v825
      %v1377 = vpop.f32.mrb[0].mxu0
      %v1378 = vadd.f32 0.0, %v1377
      %v1379 = vpop.f32.mrb[0].mxu0
      %v1380 = vpop.f32.mrb[0].mxu0
      %v1381 = vadd.f32 0.0, %v1380
      %v1382 = vpop.f32.mrb[0].mxu0
      %1383 = vmatprep.mubr.bf16.mxu0 %v1091
      %1384 = vmatmul.mubr.bf16.gmra.mrb[0].mxu0 %v827
      %v1385 = vpop.f32.mrb[0].mxu0
      %v1386 = vadd.f32 0.0, %v1385
      %v1387 = vpop.f32.mrb[0].mxu0
      %v1388 = vpop.f32.mrb[0].mxu0
      %v1389 = vadd.f32 0.0, %v1388
      %v1390 = vpop.f32.mrb[0].mxu0
      %1391 = vmatprep.mubr.bf16.mxu0 %v1094
      %1392 = vmatmul.mubr.bf16.gmra.mrb[0].mxu0 %v829
      %v1393 = vpop.f32.mrb[0].mxu0
      %v1394 = vadd.f32 0.0, %v1393
      %v1395 = vpop.f32.mrb[0].mxu0
      %v1396 = vpop.f32.mrb[0].mxu0
      %v1397 = vadd.f32 0.0, %v1396
      %v1398 = vpop.f32.mrb[0].mxu0
      %1399 = vmatprep.mubr.bf16.mxu0 %v1097
      %1400 = vmatmul.mubr.bf16.gmra.mrb[0].mxu0 %v831
      %v1401 = vpop.f32.mrb[0].mxu0
      %v1402 = vadd.f32 0.0, %v1401
      %v1403 = vpop.f32.mrb[0].mxu0
      %v1404 = vpop.f32.mrb[0].mxu0
      %v1405 = vadd.f32 0.0, %v1404
      %v1406 = vpop.f32.mrb[0].mxu0
      %1407 = vmatprep.mubr.bf16.mxu0 %v1100
      %1408 = vmatmul.mubr.bf16.gmra.mrb[0].mxu0 %v833
      %v1409 = vpop.f32.mrb[0].mxu0
      %v1410 = vadd.f32 0.0, %v1409
      %v1411 = vpop.f32.mrb[0].mxu0
      %v1412 = vpop.f32.mrb[0].mxu0
      %v1413 = vadd.f32 0.0, %v1412
      %v1414 = vpop.f32.mrb[0].mxu0
      %1415 = vmatprep.mubr.bf16.mxu0 %v1103
      %1416 = vmatmul.mubr.bf16.gmra.mrb[0].mxu0 %v835
      %v1417 = vpop.f32.mrb[0].mxu0
      %v1418 = vadd.f32 0.0, %v1417
      %v1419 = vpop.f32.mrb[0].mxu0
      %v1420 = vpop.f32.mrb[0].mxu0
      %v1421 = vadd.f32 0.0, %v1420
      %v1422 = vpop.f32.mrb[0].mxu0
      %1423 = vmatprep.mubr.bf16.mxu0 %v1106
      %1424 = vmatmul.mubr.bf16.gmra.mrb[0].mxu0 %v837
      %v1425 = vpop.f32.mrb[0].mxu0
      %v1426 = vadd.f32 0.0, %v1425
      %v1427 = vpop.f32.mrb[0].mxu0
      %v1428 = vpop.f32.mrb[0].mxu0
      %v1429 = vadd.f32 0.0, %v1428
      %v1430 = vpop.f32.mrb[0].mxu0
      %1431 = vmatprep.mubr.bf16.mxu0 %v1109
      %1432 = vmatmul.mubr.bf16.gmra.mrb[0].mxu0 %v839
      %v1433 = vpop.f32.mrb[0].mxu0
      %v1434 = vadd.f32 0.0, %v1433
      %v1435 = vpop.f32.mrb[0].mxu0
      %v1436 = vpop.f32.mrb[0].mxu0
      %v1437 = vadd.f32 0.0, %v1436
      %v1438 = vpop.f32.mrb[0].mxu0
      %1439 = vmatprep.mubr.bf16.mxu0 %v1112
      %1440 = vmatmul.mubr.bf16.gmra.mrb[0].mxu0 %v841
      %v1441 = vpop.f32.mrb[0].mxu0
      %v1442 = vadd.f32 0.0, %v1441
      %v1443 = vpop.f32.mrb[0].mxu0
      %v1444 = vpop.f32.mrb[0].mxu0
      %v1445 = vadd.f32 0.0, %v1444
      %v1446 = vpop.f32.mrb[0].mxu0
      %1447 = vmatprep.mubr.bf16.mxu0 %v1115
      %1448 = vmatmul.mubr.bf16.gmra.mrb[0].mxu0 %v843
      %v1449 = vpop.f32.mrb[0].mxu0
      %v1450 = vadd.f32 0.0, %v1449
      %v1451 = vpop.f32.mrb[0].mxu0
      %v1452 = vpop.f32.mrb[0].mxu0
      %v1453 = vadd.f32 0.0, %v1452
      %v1454 = vpop.f32.mrb[0].mxu0
      %1455 = vmatprep.mubr.bf16.mxu0 %v1118
      %1456 = vmatmul.mubr.bf16.gmra.mrb[0].mxu0 %v845
      %v1457 = vpop.f32.mrb[0].mxu0
      %v1458 = vadd.f32 0.0, %v1457
      %v1459 = vpop.f32.mrb[0].mxu0
      %v1460 = vpop.f32.mrb[0].mxu0
      %v1461 = vadd.f32 0.0, %v1460
      %v1462 = vpop.f32.mrb[0].mxu0
      %1463 = vmatprep.mubr.bf16.mxu0 %v1121
      %1464 = vmatmul.mubr.bf16.gmra.mrb[0].mxu0 %v847
      %v1465 = vpop.f32.mrb[0].mxu0
      %v1466 = vadd.f32 0.0, %v1465
      %v1467 = vpop.f32.mrb[0].mxu0
      %v1468 = vpop.f32.mrb[0].mxu0
      %v1469 = vadd.f32 0.0, %v1468
      %v1470 = vpop.f32.mrb[0].mxu0
      %1471 = vmatprep.mubr.bf16.mxu0 %v1124
      %1472 = vmatmul.mubr.bf16.gmra.mrb[0].mxu0 %v849
      %v1473 = vpop.f32.mrb[0].mxu0
      %v1474 = vadd.f32 0.0, %v1473
      %v1475 = vpop.f32.mrb[0].mxu0
      %v1476 = vpop.f32.mrb[0].mxu0
      %v1477 = vadd.f32 0.0, %v1476
      %v1478 = vpop.f32.mrb[0].mxu0
      %1479 = vmatprep.mubr.bf16.mxu0 %v1127
      %1480 = vmatmul.mubr.bf16.gmra.mrb[0].mxu0 %v851
      %v1481 = vpop.f32.mrb[0].mxu0
      %v1482 = vadd.f32 0.0, %v1481
      %v1483 = vpop.f32.mrb[0].mxu0
      %v1484 = vpop.f32.mrb[0].mxu0
      %v1485 = vadd.f32 0.0, %v1484
      %v1486 = vpop.f32.mrb[0].mxu0
      %1487 = vmatprep.mubr.bf16.mxu0 %v1130
      %1488 = vmatmul.mubr.bf16.gmra.mrb[0].mxu0 %v853
      %v1489 = vpop.f32.mrb[0].mxu0
      %v1490 = vadd.f32 0.0, %v1489
      %v1491 = vpop.f32.mrb[0].mxu0
      %v1492 = vpop.f32.mrb[0].mxu0
      %v1493 = vadd.f32 0.0, %v1492
      %v1494 = vpop.f32.mrb[0].mxu0
      %1495 = vmatprep.mubr.bf16.mxu0 %v1133
      %1496 = vmatmul.mubr.bf16.gmra.mrb[0].mxu0 %v855
      %v1497 = vpop.f32.mrb[0].mxu0
      %v1498 = vadd.f32 0.0, %v1497
      %v1499 = vpop.f32.mrb[0].mxu0
      %v1500 = vpop.f32.mrb[0].mxu0
      %v1501 = vadd.f32 0.0, %v1500
      %v1502 = vpop.f32.mrb[0].mxu0
      %1503 = vmatprep.mubr.bf16.mxu0 %v1136
      %1504 = vmatmul.mubr.bf16.gmra.mrb[0].mxu0 %v857
      %v1505 = vpop.f32.mrb[0].mxu0
      %v1506 = vadd.f32 0.0, %v1505
      %v1507 = vpop.f32.mrb[0].mxu0
      %v1508 = vpop.f32.mrb[0].mxu0
      %v1509 = vadd.f32 0.0, %v1508
      %v1510 = vpop.f32.mrb[0].mxu0
      %1511 = vmatprep.mubr.bf16.mxu0 %v1139
      %1512 = vmatmul.mubr.bf16.gmra.mrb[0].mxu0 %v859
      %v1513 = vpop.f32.mrb[0].mxu0
      %v1514 = vadd.f32 0.0, %v1513
      %v1515 = vpop.f32.mrb[0].mxu0
      %v1516 = vpop.f32.mrb[0].mxu0
      %v1517 = vadd.f32 0.0, %v1516
      %v1518 = vpop.f32.mrb[0].mxu0
      %1519 = vmatprep.mubr.bf16.mxu0 %v1142
      %1520 = vmatmul.mubr.bf16.gmra.mrb[0].mxu0 %v861
      %v1521 = vpop.f32.mrb[0].mxu0
      %v1522 = vadd.f32 0.0, %v1521
      %v1523 = vpop.f32.mrb[0].mxu0
      %v1524 = vpop.f32.mrb[0].mxu0
      %v1525 = vadd.f32 0.0, %v1524
      %v1526 = vpop.f32.mrb[0].mxu0
      %1527 = vmatprep.mubr.bf16.mxu0 %v1145
      %1528 = vmatmul.mubr.bf16.gmra.mrb[0].mxu0 %v863
      %v1529 = vpop.f32.mrb[0].mxu0
      %v1530 = vadd.f32 0.0, %v1529
      %v1531 = vpop.f32.mrb[0].mxu0
      %v1532 = vpop.f32.mrb[0].mxu0
      %v1533 = vadd.f32 0.0, %v1532
      %v1534 = vpop.f32.mrb[0].mxu0
      %1535 = vmatprep.mubr.bf16.mxu0 %v1148
      %1536 = vmatmul.mubr.bf16.gmra.mrb[0].mxu0 %v865
      %v1537 = vpop.f32.mrb[0].mxu0
      %v1538 = vadd.f32 0.0, %v1537
      %v1539 = vpop.f32.mrb[0].mxu0
      %v1540 = vpop.f32.mrb[0].mxu0
      %v1541 = vadd.f32 0.0, %v1540
      %v1542 = vpop.f32.mrb[0].mxu0
      %1543 = vmatprep.mubr.bf16.mxu0 %v1151
      %1544 = vmatmul.mubr.bf16.gmra.mrb[0].mxu0 %v867
      %v1545 = vpop.f32.mrb[0].mxu0
      %v1546 = vadd.f32 0.0, %v1545
      %v1547 = vpop.f32.mrb[0].mxu0
      %v1548 = vpop.f32.mrb[0].mxu0
      %v1549 = vadd.f32 0.0, %v1548
      %v1550 = vpop.f32.mrb[0].mxu0
      %1551 = vmatprep.mubr.bf16.mxu0 %v1154
      %1552 = vmatmul.mubr.bf16.gmra.mrb[0].mxu0 %v869
      %v1553 = vpop.f32.mrb[0].mxu0
      %v1554 = vadd.f32 0.0, %v1553
      %v1555 = vpop.f32.mrb[0].mxu0
      %v1556 = vpop.f32.mrb[0].mxu0
      %v1557 = vadd.f32 0.0, %v1556
      %v1558 = vpop.f32.mrb[0].mxu0
      %1559 = vmatprep.mubr.bf16.mxu0 %v1157
      %1560 = vmatmul.mubr.bf16.gmra.mrb[0].mxu0 %v871
      %v1561 = vpop.f32.mrb[0].mxu0
      %v1562 = vadd.f32 0.0, %v1561
      %v1563 = vpop.f32.mrb[0].mxu0
      %v1564 = vpop.f32.mrb[0].mxu0
      %v1565 = vadd.f32 0.0, %v1564
      %v1566 = vpop.f32.mrb[0].mxu0
      %1567 = vmatprep.mubr.bf16.mxu0 %v1160
      %1568 = vmatmul.mubr.bf16.gmra.mrb[0].mxu0 %v873
      %v1569 = vpop.f32.mrb[0].mxu0
      %v1570 = vadd.f32 0.0, %v1569
      %v1571 = vpop.f32.mrb[0].mxu0
      %v1572 = vpop.f32.mrb[0].mxu0
      %v1573 = vadd.f32 0.0, %v1572
      %v1574 = vpop.f32.mrb[0].mxu0
      %1575 = vmatprep.mubr.bf16.mxu0 %v1163
      %1576 = vmatmul.mubr.bf16.gmra.mrb[0].mxu0 %v875
      %v1577 = vpop.f32.mrb[0].mxu0
      %v1578 = vadd.f32 0.0, %v1577
      %v1579 = vpop.f32.mrb[0].mxu0
      %v1580 = vpop.f32.mrb[0].mxu0
      %v1581 = vadd.f32 0.0, %v1580
      %v1582 = vpop.f32.mrb[0].mxu0
      %1583 = vmatprep.mubr.bf16.mxu0 %v1166
      %1584 = vmatmul.mubr.bf16.gmra.mrb[0].mxu0 %v877
      %v1585 = vpop.f32.mrb[0].mxu0
      %v1586 = vadd.f32 0.0, %v1585
      %v1587 = vpop.f32.mrb[0].mxu0
      %v1588 = vpop.f32.mrb[0].mxu0
      %v1589 = vadd.f32 0.0, %v1588
      %v1590 = vpop.f32.mrb[0].mxu0
      %1591 = vmatprep.mubr.bf16.mxu0 %v1169
      %1592 = vmatmul.mubr.bf16.gmra.mrb[0].mxu0 %v879
      %v1593 = vpop.f32.mrb[0].mxu0
      %v1594 = vadd.f32 0.0, %v1593
      %v1595 = vpop.f32.mrb[0].mxu0
      %v1596 = vpop.f32.mrb[0].mxu0
      %v1597 = vadd.f32 0.0, %v1596
      %v1598 = vpop.f32.mrb[0].mxu0
      %1599 = vmatprep.mubr.bf16.mxu0 %v1172
      %1600 = vmatmul.mubr.bf16.gmra.mrb[0].mxu0 %v881
      %v1601 = vpop.f32.mrb[0].mxu0
      %v1602 = vadd.f32 0.0, %v1601
      %v1603 = vpop.f32.mrb[0].mxu0
      %v1604 = vpop.f32.mrb[0].mxu0
      %v1605 = vadd.f32 0.0, %v1604
      %v1606 = vpop.f32.mrb[0].mxu0
      %1607 = vmatprep.mubr.bf16.mxu0 %v1175
      %1608 = vmatmul.mubr.bf16.gmra.mrb[0].mxu0 %v883
      %v1609 = vpop.f32.mrb[0].mxu0
      %v1610 = vadd.f32 0.0, %v1609
      %v1611 = vpop.f32.mrb[0].mxu0
      %v1612 = vpop.f32.mrb[0].mxu0
      %v1613 = vadd.f32 0.0, %v1612
      %v1614 = vpop.f32.mrb[0].mxu0
      %1615 = vmatprep.mubr.bf16.mxu0 %v1178
      %1616 = vmatmul.mubr.bf16.gmra.mrb[0].mxu0 %v885
      %v1617 = vpop.f32.mrb[0].mxu0
      %v1618 = vadd.f32 0.0, %v1617
      %v1619 = vpop.f32.mrb[0].mxu0
      %v1620 = vpop.f32.mrb[0].mxu0
      %v1621 = vadd.f32 0.0, %v1620
      %v1622 = vpop.f32.mrb[0].mxu0
      %1623 = vmatprep.mubr.bf16.mxu0 %v1181
      %1624 = vmatmul.mubr.bf16.gmra.mrb[0].mxu0 %v887
      %v1625 = vpop.f32.mrb[0].mxu0
      %v1626 = vadd.f32 0.0, %v1625
      %v1627 = vpop.f32.mrb[0].mxu0
      %v1628 = vpop.f32.mrb[0].mxu0
      %v1629 = vadd.f32 0.0, %v1628
      %v1630 = vpop.f32.mrb[0].mxu0
      %1631 = vmatprep.mubr.bf16.mxu0 %v1184
      %1632 = vmatmul.mubr.bf16.gmra.mrb[0].mxu0 %v889
      %v1633 = vpop.f32.mrb[0].mxu0
      %v1634 = vadd.f32 0.0, %v1633
      %v1635 = vpop.f32.mrb[0].mxu0
      %v1636 = vpop.f32.mrb[0].mxu0
      %v1637 = vadd.f32 0.0, %v1636
      %v1638 = vpop.f32.mrb[0].mxu0
      %1639 = vmatprep.mubr.bf16.mxu0 %v1187
      %1640 = vmatmul.mubr.bf16.gmra.mrb[0].mxu0 %v891
      %v1641 = vpop.f32.mrb[0].mxu0
      %v1642 = vadd.f32 0.0, %v1641
      %v1643 = vpop.f32.mrb[0].mxu0
      %v1644 = vpop.f32.mrb[0].mxu0
      %v1645 = vadd.f32 0.0, %v1644
      %v1646 = vpop.f32.mrb[0].mxu0
      %1647 = vmatprep.mubr.bf16.mxu0 %v1190
      %1648 = vmatmul.mubr.bf16.gmra.mrb[0].mxu0 %v893
      %v1649 = vpop.f32.mrb[0].mxu0
      %v1650 = vadd.f32 0.0, %v1649
      %v1651 = vpop.f32.mrb[0].mxu0
      %v1652 = vpop.f32.mrb[0].mxu0
      %v1653 = vadd.f32 0.0, %v1652
      %v1654 = vpop.f32.mrb[0].mxu0
      %1655 = vmatprep.mubr.bf16.mxu0 %v1193
      %1656 = vmatmul.mubr.bf16.gmra.mrb[0].mxu0 %v895
      %v1657 = vpop.f32.mrb[0].mxu0
      %v1658 = vadd.f32 0.0, %v1657
      %v1659 = vpop.f32.mrb[0].mxu0
      %v1660 = vpop.f32.mrb[0].mxu0
      %v1661 = vadd.f32 0.0, %v1660
      %v1662 = vpop.f32.mrb[0].mxu0
      %1663 = vmatprep.mubr.bf16.mxu0 %v1196
      %1664 = vmatmul.mubr.bf16.gmra.mrb[0].mxu0 %v897
      %v1665 = vpop.f32.mrb[0].mxu0
      %v1666 = vadd.f32 0.0, %v1665
      %v1667 = vpop.f32.mrb[0].mxu0
      %v1668 = vpop.f32.mrb[0].mxu0
      %v1669 = vadd.f32 0.0, %v1668
      %v1670 = vpop.f32.mrb[0].mxu0
      %1671 = vmatprep.mubr.bf16.mxu0 %v1199
      %1672 = vmatmul.mubr.bf16.gmra.mrb[0].mxu0 %v899
      %v1673 = vpop.f32.mrb[0].mxu0
      %v1674 = vadd.f32 0.0, %v1673
      %v1675 = vpop.f32.mrb[0].mxu0
      %v1676 = vpop.f32.mrb[0].mxu0
      %v1677 = vadd.f32 0.0, %v1676
      %v1678 = vpop.f32.mrb[0].mxu0
      %1679 = vmatprep.mubr.bf16.mxu0 %v1202
      %1680 = vmatmul.mubr.bf16.gmra.mrb[0].mxu0 %v901
      %v1681 = vpop.f32.mrb[0].mxu0
      %v1682 = vadd.f32 0.0, %v1681
      %v1683 = vpop.f32.mrb[0].mxu0
      %v1684 = vpop.f32.mrb[0].mxu0
      %v1685 = vadd.f32 0.0, %v1684
      %v1686 = vpop.f32.mrb[0].mxu0
      %1687 = vmatprep.mubr.bf16.mxu0 %v1205
      %1688 = vmatmul.mubr.bf16.gmra.mrb[0].mxu0 %v903
      %v1689 = vpop.f32.mrb[0].mxu0
      %v1690 = vadd.f32 0.0, %v1689
      %v1691 = vpop.f32.mrb[0].mxu0
      %v1692 = vpop.f32.mrb[0].mxu0
      %v1693 = vadd.f32 0.0, %v1692
      %v1694 = vpop.f32.mrb[0].mxu0
      %1695 = vmatprep.mubr.bf16.mxu0 %v1208
      %1696 = vmatmul.mubr.bf16.gmra.mrb[0].mxu0 %v905
      %v1697 = vpop.f32.mrb[0].mxu0
      %v1698 = vadd.f32 0.0, %v1697
      %v1699 = vpop.f32.mrb[0].mxu0
      %v1700 = vpop.f32.mrb[0].mxu0
      %v1701 = vadd.f32 0.0, %v1700
      %v1702 = vpop.f32.mrb[0].mxu0
      %1703 = vmatprep.mubr.bf16.mxu0 %v1211
      %1704 = vmatmul.mubr.bf16.gmra.mrb[0].mxu0 %v907
      %v1705 = vpop.f32.mrb[0].mxu0
      %v1706 = vadd.f32 0.0, %v1705
      %v1707 = vpop.f32.mrb[0].mxu0
      %v1708 = vpop.f32.mrb[0].mxu0
      %v1709 = vadd.f32 0.0, %v1708
      %v1710 = vpop.f32.mrb[0].mxu0
      %1711 = vmatprep.mubr.bf16.mxu0 %v1214
      %1712 = vmatmul.mubr.bf16.gmra.mrb[0].mxu0 %v909
      %v1713 = vpop.f32.mrb[0].mxu0
      %v1714 = vadd.f32 0.0, %v1713
      %v1715 = vpop.f32.mrb[0].mxu0
      %v1716 = vpop.f32.mrb[0].mxu0
      %v1717 = vadd.f32 0.0, %v1716
      %v1718 = vpop.f32.mrb[0].mxu0
      %1719 = vmatprep.mubr.bf16.mxu0 %v1217
      %1720 = vmatmul.mubr.bf16.gmra.mrb[0].mxu0 %v911
      %v1721 = vpop.f32.mrb[0].mxu0
      %v1722 = vadd.f32 0.0, %v1721
      %v1723 = vpop.f32.mrb[0].mxu0
      %v1724 = vpop.f32.mrb[0].mxu0
      %v1725 = vadd.f32 0.0, %v1724
      %v1726 = vpop.f32.mrb[0].mxu0
      %1727 = vmatprep.mubr.bf16.mxu0 %v1220
      %1728 = vmatmul.mubr.bf16.gmra.mrb[0].mxu0 %v913
      %v1729 = vpop.f32.mrb[0].mxu0
      %v1730 = vadd.f32 0.0, %v1729
      %v1731 = vpop.f32.mrb[0].mxu0
      %v1732 = vpop.f32.mrb[0].mxu0
      %v1733 = vadd.f32 0.0, %v1732
      %v1734 = vpop.f32.mrb[0].mxu0
      %1735 = vmatprep.mubr.bf16.mxu0 %v1223
      %1736 = vmatmul.mubr.bf16.gmra.mrb[0].mxu0 %v915
      %v1737 = vpop.f32.mrb[0].mxu0
      %v1738 = vadd.f32 0.0, %v1737
      %v1739 = vpop.f32.mrb[0].mxu0
      %v1740 = vpop.f32.mrb[0].mxu0
      %v1741 = vadd.f32 0.0, %v1740
      %v1742 = vpop.f32.mrb[0].mxu0
      %1743 = vmatprep.mubr.bf16.mxu0 %v1226
      %1744 = vmatmul.mubr.bf16.gmra.mrb[0].mxu0 %v917
      %v1745 = vpop.f32.mrb[0].mxu0
      %v1746 = vadd.f32 0.0, %v1745
      %v1747 = vpop.f32.mrb[0].mxu0
      %v1748 = vpop.f32.mrb[0].mxu0
      %v1749 = vadd.f32 0.0, %v1748
      %v1750 = vpop.f32.mrb[0].mxu0
      %1751 = vmatprep.mubr.bf16.mxu0 %v1229
      %1752 = vmatmul.mubr.bf16.gmra.mrb[0].mxu0 %v919
      %v1753 = vpop.f32.mrb[0].mxu0
      %v1754 = vadd.f32 0.0, %v1753
      %v1755 = vpop.f32.mrb[0].mxu0
      %v1756 = vpop.f32.mrb[0].mxu0
      %v1757 = vadd.f32 0.0, %v1756
      %v1758 = vpop.f32.mrb[0].mxu0
      %1759 = vmatprep.mubr.bf16.mxu0 %v1232
      %1760 = vmatmul.mubr.bf16.gmra.mrb[0].mxu0 %v921
      %v1761 = vpop.f32.mrb[0].mxu0
      %v1762 = vadd.f32 0.0, %v1761
      %v1763 = vpop.f32.mrb[0].mxu0
      %v1764 = vpop.f32.mrb[0].mxu0
      %v1765 = vadd.f32 0.0, %v1764
      %v1766 = vpop.f32.mrb[0].mxu0
      %1767 = vmatprep.mubr.bf16.mxu0 %v1235
      %1768 = vmatmul.mubr.bf16.gmra.mrb[0].mxu0 %v923
      %v1769 = vpop.f32.mrb[0].mxu0
      %v1770 = vadd.f32 0.0, %v1769
      %v1771 = vpop.f32.mrb[0].mxu0
      %v1772 = vpop.f32.mrb[0].mxu0
      %v1773 = vadd.f32 0.0, %v1772
      %v1774 = vpop.f32.mrb[0].mxu0
      %1775 = vmatprep.mubr.bf16.mxu0 %v1238
      %1776 = vmatmul.mubr.bf16.gmra.mrb[0].mxu0 %v925
      %v1777 = vpop.f32.mrb[0].mxu0
      %v1778 = vadd.f32 0.0, %v1777
      %v1779 = vpop.f32.mrb[0].mxu0
      %v1780 = vpop.f32.mrb[0].mxu0
      %v1781 = vadd.f32 0.0, %v1780
      %v1782 = vpop.f32.mrb[0].mxu0
      %1783 = vmatprep.mubr.bf16.mxu0 %v1241
      %1784 = vmatmul.mubr.bf16.gmra.mrb[0].mxu0 %v927
      %v1785 = vpop.f32.mrb[0].mxu0
      %v1786 = vadd.f32 0.0, %v1785
      %v1787 = vpop.f32.mrb[0].mxu0
      %v1788 = vpop.f32.mrb[0].mxu0
      %v1789 = vadd.f32 0.0, %v1788
      %v1790 = vpop.f32.mrb[0].mxu0
      %1791 = vdwg.mxu0
      %v1792 = vld [vmem:[%s256] sm:$0x1]
      %v1794 = vlaneseq
      %v1795 = vshrl.u32 %v1794, 7
      %v1796 = vsub.s32 0, %v1795
      %v1797 = vrot.slane %v1792, %v1796
      %v1799 = vmul.f32 %v1282, %v1797
      %v1800 = vmul.f32 %v1285, %v1797
      %v1801 = vmul.f32 %v1290, %v1797
      %v1802 = vmul.f32 %v1293, %v1797
      %v1803 = vmul.f32 %v1298, %v1797
      %v1804 = vmul.f32 %v1301, %v1797
      %v1805 = vmul.f32 %v1306, %v1797
      %v1806 = vmul.f32 %v1309, %v1797
      %v1807 = vmul.f32 %v1314, %v1797
      %v1808 = vmul.f32 %v1317, %v1797
      %v1809 = vmul.f32 %v1322, %v1797
      %v1810 = vmul.f32 %v1325, %v1797
      %v1811 = vmul.f32 %v1330, %v1797
      %v1812 = vmul.f32 %v1333, %v1797
      %v1813 = vmul.f32 %v1338, %v1797
      %v1814 = vmul.f32 %v1341, %v1797
      %v1815 = vmul.f32 %v1346, %v1797
      %v1816 = vmul.f32 %v1349, %v1797
      %v1817 = vmul.f32 %v1354, %v1797
      %v1818 = vmul.f32 %v1357, %v1797
      %v1819 = vmul.f32 %v1362, %v1797
      %v1820 = vmul.f32 %v1365, %v1797
      %v1821 = vmul.f32 %v1370, %v1797
      %v1822 = vmul.f32 %v1373, %v1797
      %v1823 = vmul.f32 %v1378, %v1797
      %v1824 = vmul.f32 %v1381, %v1797
      %v1825 = vmul.f32 %v1386, %v1797
      %v1826 = vmul.f32 %v1389, %v1797
      %v1827 = vmul.f32 %v1394, %v1797
      %v1828 = vmul.f32 %v1397, %v1797
      %v1829 = vmul.f32 %v1402, %v1797
      %v1830 = vmul.f32 %v1405, %v1797
      %v1831 = vmul.f32 %v1410, %v1797
      %v1832 = vmul.f32 %v1413, %v1797
      %v1833 = vmul.f32 %v1418, %v1797
      %v1834 = vmul.f32 %v1421, %v1797
      %v1835 = vmul.f32 %v1426, %v1797
      %v1836 = vmul.f32 %v1429, %v1797
      %v1837 = vmul.f32 %v1434, %v1797
      %v1838 = vmul.f32 %v1437, %v1797
      %v1839 = vmul.f32 %v1442, %v1797
      %v1840 = vmul.f32 %v1445, %v1797
      %v1841 = vmul.f32 %v1450, %v1797
      %v1842 = vmul.f32 %v1453, %v1797
      %v1843 = vmul.f32 %v1458, %v1797
      %v1844 = vmul.f32 %v1461, %v1797
      %v1845 = vmul.f32 %v1466, %v1797
      %v1846 = vmul.f32 %v1469, %v1797
      %v1847 = vmul.f32 %v1474, %v1797
      %v1848 = vmul.f32 %v1477, %v1797
      %v1849 = vmul.f32 %v1482, %v1797
      %v1850 = vmul.f32 %v1485, %v1797
      %v1851 = vmul.f32 %v1490, %v1797
      %v1852 = vmul.f32 %v1493, %v1797
      %v1853 = vmul.f32 %v1498, %v1797
      %v1854 = vmul.f32 %v1501, %v1797
      %v1855 = vmul.f32 %v1506, %v1797
      %v1856 = vmul.f32 %v1509, %v1797
      %v1857 = vmul.f32 %v1514, %v1797
      %v1858 = vmul.f32 %v1517, %v1797
      %v1859 = vmul.f32 %v1522, %v1797
      %v1860 = vmul.f32 %v1525, %v1797
      %v1861 = vmul.f32 %v1530, %v1797
      %v1862 = vmul.f32 %v1533, %v1797
      %v1863 = vmul.f32 %v1538, %v1797
      %v1864 = vmul.f32 %v1541, %v1797
      %v1865 = vmul.f32 %v1546, %v1797
      %v1866 = vmul.f32 %v1549, %v1797
      %v1867 = vmul.f32 %v1554, %v1797
      %v1868 = vmul.f32 %v1557, %v1797
      %v1869 = vmul.f32 %v1562, %v1797
      %v1870 = vmul.f32 %v1565, %v1797
      %v1871 = vmul.f32 %v1570, %v1797
      %v1872 = vmul.f32 %v1573, %v1797
      %v1873 = vmul.f32 %v1578, %v1797
      %v1874 = vmul.f32 %v1581, %v1797
      %v1875 = vmul.f32 %v1586, %v1797
      %v1876 = vmul.f32 %v1589, %v1797
      %v1877 = vmul.f32 %v1594, %v1797
      %v1878 = vmul.f32 %v1597, %v1797
      %v1879 = vmul.f32 %v1602, %v1797
      %v1880 = vmul.f32 %v1605, %v1797
      %v1881 = vmul.f32 %v1610, %v1797
      %v1882 = vmul.f32 %v1613, %v1797
      %v1883 = vmul.f32 %v1618, %v1797
      %v1884 = vmul.f32 %v1621, %v1797
      %v1885 = vmul.f32 %v1626, %v1797
      %v1886 = vmul.f32 %v1629, %v1797
      %v1887 = vmul.f32 %v1634, %v1797
      %v1888 = vmul.f32 %v1637, %v1797
      %v1889 = vmul.f32 %v1642, %v1797
      %v1890 = vmul.f32 %v1645, %v1797
      %v1891 = vmul.f32 %v1650, %v1797
      %v1892 = vmul.f32 %v1653, %v1797
      %v1893 = vmul.f32 %v1658, %v1797
      %v1894 = vmul.f32 %v1661, %v1797
      %v1895 = vmul.f32 %v1666, %v1797
      %v1896 = vmul.f32 %v1669, %v1797
      %v1897 = vmul.f32 %v1674, %v1797
      %v1898 = vmul.f32 %v1677, %v1797
      %v1899 = vmul.f32 %v1682, %v1797
      %v1900 = vmul.f32 %v1685, %v1797
      %v1901 = vmul.f32 %v1690, %v1797
      %v1902 = vmul.f32 %v1693, %v1797
      %v1903 = vmul.f32 %v1698, %v1797
      %v1904 = vmul.f32 %v1701, %v1797
      %v1905 = vmul.f32 %v1706, %v1797
      %v1906 = vmul.f32 %v1709, %v1797
      %v1907 = vmul.f32 %v1714, %v1797
      %v1908 = vmul.f32 %v1717, %v1797
      %v1909 = vmul.f32 %v1722, %v1797
      %v1910 = vmul.f32 %v1725, %v1797
      %v1911 = vmul.f32 %v1730, %v1797
      %v1912 = vmul.f32 %v1733, %v1797
      %v1913 = vmul.f32 %v1738, %v1797
      %v1914 = vmul.f32 %v1741, %v1797
      %v1915 = vmul.f32 %v1746, %v1797
      %v1916 = vmul.f32 %v1749, %v1797
      %v1917 = vmul.f32 %v1754, %v1797
      %v1918 = vmul.f32 %v1757, %v1797
      %v1919 = vmul.f32 %v1762, %v1797
      %v1920 = vmul.f32 %v1765, %v1797
      %v1921 = vmul.f32 %v1770, %v1797
      %v1922 = vmul.f32 %v1773, %v1797
      %v1923 = vmul.f32 %v1778, %v1797
      %v1924 = vmul.f32 %v1781, %v1797
      %v1925 = vmul.f32 %v1786, %v1797
      %v1926 = vmul.f32 %v1789, %v1797
      %v1927 = vld [vmem:[%s259] sm:$0x1]
      %v1929 = vlaneseq
      %v1930 = vshrl.u32 %v1929, 7
      %v1931 = vsub.s32 0, %v1930
      %v1932 = vrot.slane %v1927, %v1931
      %v1934 = vadd.f32 %v1799, %v1932
      %v1935 = vadd.f32 %v1800, %v1932
      %v1936 = vadd.f32 %v1801, %v1932
      %v1937 = vadd.f32 %v1802, %v1932
      %v1938 = vadd.f32 %v1803, %v1932
      %v1939 = vadd.f32 %v1804, %v1932
      %v1940 = vadd.f32 %v1805, %v1932
      %v1941 = vadd.f32 %v1806, %v1932
      %v1942 = vadd.f32 %v1807, %v1932
      %v1943 = vadd.f32 %v1808, %v1932
      %v1944 = vadd.f32 %v1809, %v1932
      %v1945 = vadd.f32 %v1810, %v1932
      %v1946 = vadd.f32 %v1811, %v1932
      %v1947 = vadd.f32 %v1812, %v1932
      %v1948 = vadd.f32 %v1813, %v1932
      %v1949 = vadd.f32 %v1814, %v1932
      %v1950 = vadd.f32 %v1815, %v1932
      %v1951 = vadd.f32 %v1816, %v1932
      %v1952 = vadd.f32 %v1817, %v1932
      %v1953 = vadd.f32 %v1818, %v1932
      %v1954 = vadd.f32 %v1819, %v1932
      %v1955 = vadd.f32 %v1820, %v1932
      %v1956 = vadd.f32 %v1821, %v1932
      %v1957 = vadd.f32 %v1822, %v1932
      %v1958 = vadd.f32 %v1823, %v1932
      %v1959 = vadd.f32 %v1824, %v1932
      %v1960 = vadd.f32 %v1825, %v1932
      %v1961 = vadd.f32 %v1826, %v1932
      %v1962 = vadd.f32 %v1827, %v1932
      %v1963 = vadd.f32 %v1828, %v1932
      %v1964 = vadd.f32 %v1829, %v1932
      %v1965 = vadd.f32 %v1830, %v1932
      %v1966 = vadd.f32 %v1831, %v1932
      %v1967 = vadd.f32 %v1832, %v1932
      %v1968 = vadd.f32 %v1833, %v1932
      %v1969 = vadd.f32 %v1834, %v1932
      %v1970 = vadd.f32 %v1835, %v1932
      %v1971 = vadd.f32 %v1836, %v1932
      %v1972 = vadd.f32 %v1837, %v1932
      %v1973 = vadd.f32 %v1838, %v1932
      %v1974 = vadd.f32 %v1839, %v1932
      %v1975 = vadd.f32 %v1840, %v1932
      %v1976 = vadd.f32 %v1841, %v1932
      %v1977 = vadd.f32 %v1842, %v1932
      %v1978 = vadd.f32 %v1843, %v1932
      %v1979 = vadd.f32 %v1844, %v1932
      %v1980 = vadd.f32 %v1845, %v1932
      %v1981 = vadd.f32 %v1846, %v1932
      %v1982 = vadd.f32 %v1847, %v1932
      %v1983 = vadd.f32 %v1848, %v1932
      %v1984 = vadd.f32 %v1849, %v1932
      %v1985 = vadd.f32 %v1850, %v1932
      %v1986 = vadd.f32 %v1851, %v1932
      %v1987 = vadd.f32 %v1852, %v1932
      %v1988 = vadd.f32 %v1853, %v1932
      %v1989 = vadd.f32 %v1854, %v1932
      %v1990 = vadd.f32 %v1855, %v1932
      %v1991 = vadd.f32 %v1856, %v1932
      %v1992 = vadd.f32 %v1857, %v1932
      %v1993 = vadd.f32 %v1858, %v1932
      %v1994 = vadd.f32 %v1859, %v1932
      %v1995 = vadd.f32 %v1860, %v1932
      %v1996 = vadd.f32 %v1861, %v1932
      %v1997 = vadd.f32 %v1862, %v1932
      %v1998 = vadd.f32 %v1863, %v1932
      %v1999 = vadd.f32 %v1864, %v1932
      %v2000 = vadd.f32 %v1865, %v1932
      %v2001 = vadd.f32 %v1866, %v1932
      %v2002 = vadd.f32 %v1867, %v1932
      %v2003 = vadd.f32 %v1868, %v1932
      %v2004 = vadd.f32 %v1869, %v1932
      %v2005 = vadd.f32 %v1870, %v1932
      %v2006 = vadd.f32 %v1871, %v1932
      %v2007 = vadd.f32 %v1872, %v1932
      %v2008 = vadd.f32 %v1873, %v1932
      %v2009 = vadd.f32 %v1874, %v1932
      %v2010 = vadd.f32 %v1875, %v1932
      %v2011 = vadd.f32 %v1876, %v1932
      %v2012 = vadd.f32 %v1877, %v1932
      %v2013 = vadd.f32 %v1878, %v1932
      %v2014 = vadd.f32 %v1879, %v1932
      %v2015 = vadd.f32 %v1880, %v1932
      %v2016 = vadd.f32 %v1881, %v1932
      %v2017 = vadd.f32 %v1882, %v1932
      %v2018 = vadd.f32 %v1883, %v1932
      %v2019 = vadd.f32 %v1884, %v1932
      %v2020 = vadd.f32 %v1885, %v1932
      %v2021 = vadd.f32 %v1886, %v1932
      %v2022 = vadd.f32 %v1887, %v1932
      %v2023 = vadd.f32 %v1888, %v1932
      %v2024 = vadd.f32 %v1889, %v1932
      %v2025 = vadd.f32 %v1890, %v1932
      %v2026 = vadd.f32 %v1891, %v1932
      %v2027 = vadd.f32 %v1892, %v1932
      %v2028 = vadd.f32 %v1893, %v1932
      %v2029 = vadd.f32 %v1894, %v1932
      %v2030 = vadd.f32 %v1895, %v1932
      %v2031 = vadd.f32 %v1896, %v1932
      %v2032 = vadd.f32 %v1897, %v1932
      %v2033 = vadd.f32 %v1898, %v1932
      %v2034 = vadd.f32 %v1899, %v1932
      %v2035 = vadd.f32 %v1900, %v1932
      %v2036 = vadd.f32 %v1901, %v1932
      %v2037 = vadd.f32 %v1902, %v1932
      %v2038 = vadd.f32 %v1903, %v1932
      %v2039 = vadd.f32 %v1904, %v1932
      %v2040 = vadd.f32 %v1905, %v1932
      %v2041 = vadd.f32 %v1906, %v1932
      %v2042 = vadd.f32 %v1907, %v1932
      %v2043 = vadd.f32 %v1908, %v1932
      %v2044 = vadd.f32 %v1909, %v1932
      %v2045 = vadd.f32 %v1910, %v1932
      %v2046 = vadd.f32 %v1911, %v1932
      %v2047 = vadd.f32 %v1912, %v1932
      %v2048 = vadd.f32 %v1913, %v1932
      %v2049 = vadd.f32 %v1914, %v1932
      %v2050 = vadd.f32 %v1915, %v1932
      %v2051 = vadd.f32 %v1916, %v1932
      %v2052 = vadd.f32 %v1917, %v1932
      %v2053 = vadd.f32 %v1918, %v1932
      %v2054 = vadd.f32 %v1919, %v1932
      %v2055 = vadd.f32 %v1920, %v1932
      %v2056 = vadd.f32 %v1921, %v1932
      %v2057 = vadd.f32 %v1922, %v1932
      %v2058 = vadd.f32 %v1923, %v1932
      %v2059 = vadd.f32 %v1924, %v1932
      %v2060 = vadd.f32 %v1925, %v1932
      %v2061 = vadd.f32 %v1926, %v1932
      %v2062 = vmax.f32 %v1934, 0.0
      %v2063 = vmax.f32 %v1935, 0.0
      %v2064 = vmax.f32 %v1936, 0.0
      %v2065 = vmax.f32 %v1937, 0.0
      %v2066 = vmax.f32 %v1938, 0.0
      %v2067 = vmax.f32 %v1939, 0.0
      %v2068 = vmax.f32 %v1940, 0.0
      %v2069 = vmax.f32 %v1941, 0.0
      %v2070 = vmax.f32 %v1942, 0.0
      %v2071 = vmax.f32 %v1943, 0.0
      %v2072 = vmax.f32 %v1944, 0.0
      %v2073 = vmax.f32 %v1945, 0.0
      %v2074 = vmax.f32 %v1946, 0.0
      %v2075 = vmax.f32 %v1947, 0.0
      %v2076 = vmax.f32 %v1948, 0.0
      %v2077 = vmax.f32 %v1949, 0.0
      %v2078 = vmax.f32 %v1950, 0.0
      %v2079 = vmax.f32 %v1951, 0.0
      %v2080 = vmax.f32 %v1952, 0.0
      %v2081 = vmax.f32 %v1953, 0.0
      %v2082 = vmax.f32 %v1954, 0.0
      %v2083 = vmax.f32 %v1955, 0.0
      %v2084 = vmax.f32 %v1956, 0.0
      %v2085 = vmax.f32 %v1957, 0.0
      %v2086 = vmax.f32 %v1958, 0.0
      %v2087 = vmax.f32 %v1959, 0.0
      %v2088 = vmax.f32 %v1960, 0.0
      %v2089 = vmax.f32 %v1961, 0.0
      %v2090 = vmax.f32 %v1962, 0.0
      %v2091 = vmax.f32 %v1963, 0.0
      %v2092 = vmax.f32 %v1964, 0.0
      %v2093 = vmax.f32 %v1965, 0.0
      %v2094 = vmax.f32 %v1966, 0.0
      %v2095 = vmax.f32 %v1967, 0.0
      %v2096 = vmax.f32 %v1968, 0.0
      %v2097 = vmax.f32 %v1969, 0.0
      %v2098 = vmax.f32 %v1970, 0.0
      %v2099 = vmax.f32 %v1971, 0.0
      %v2100 = vmax.f32 %v1972, 0.0
      %v2101 = vmax.f32 %v1973, 0.0
      %v2102 = vmax.f32 %v1974, 0.0
      %v2103 = vmax.f32 %v1975, 0.0
      %v2104 = vmax.f32 %v1976, 0.0
      %v2105 = vmax.f32 %v1977, 0.0
      %v2106 = vmax.f32 %v1978, 0.0
      %v2107 = vmax.f32 %v1979, 0.0
      %v2108 = vmax.f32 %v1980, 0.0
      %v2109 = vmax.f32 %v1981, 0.0
      %v2110 = vmax.f32 %v1982, 0.0
      %v2111 = vmax.f32 %v1983, 0.0
      %v2112 = vmax.f32 %v1984, 0.0
      %v2113 = vmax.f32 %v1985, 0.0
      %v2114 = vmax.f32 %v1986, 0.0
      %v2115 = vmax.f32 %v1987, 0.0
      %v2116 = vmax.f32 %v1988, 0.0
      %v2117 = vmax.f32 %v1989, 0.0
      %v2118 = vmax.f32 %v1990, 0.0
      %v2119 = vmax.f32 %v1991, 0.0
      %v2120 = vmax.f32 %v1992, 0.0
      %v2121 = vmax.f32 %v1993, 0.0
      %v2122 = vmax.f32 %v1994, 0.0
      %v2123 = vmax.f32 %v1995, 0.0
      %v2124 = vmax.f32 %v1996, 0.0
      %v2125 = vmax.f32 %v1997, 0.0
      %v2126 = vmax.f32 %v1998, 0.0
      %v2127 = vmax.f32 %v1999, 0.0
      %v2128 = vmax.f32 %v2000, 0.0
      %v2129 = vmax.f32 %v2001, 0.0
      %v2130 = vmax.f32 %v2002, 0.0
      %v2131 = vmax.f32 %v2003, 0.0
      %v2132 = vmax.f32 %v2004, 0.0
      %v2133 = vmax.f32 %v2005, 0.0
      %v2134 = vmax.f32 %v2006, 0.0
      %v2135 = vmax.f32 %v2007, 0.0
      %v2136 = vmax.f32 %v2008, 0.0
      %v2137 = vmax.f32 %v2009, 0.0
      %v2138 = vmax.f32 %v2010, 0.0
      %v2139 = vmax.f32 %v2011, 0.0
      %v2140 = vmax.f32 %v2012, 0.0
      %v2141 = vmax.f32 %v2013, 0.0
      %v2142 = vmax.f32 %v2014, 0.0
      %v2143 = vmax.f32 %v2015, 0.0
      %v2144 = vmax.f32 %v2016, 0.0
      %v2145 = vmax.f32 %v2017, 0.0
      %v2146 = vmax.f32 %v2018, 0.0
      %v2147 = vmax.f32 %v2019, 0.0
      %v2148 = vmax.f32 %v2020, 0.0
      %v2149 = vmax.f32 %v2021, 0.0
      %v2150 = vmax.f32 %v2022, 0.0
      %v2151 = vmax.f32 %v2023, 0.0
      %v2152 = vmax.f32 %v2024, 0.0
      %v2153 = vmax.f32 %v2025, 0.0
      %v2154 = vmax.f32 %v2026, 0.0
      %v2155 = vmax.f32 %v2027, 0.0
      %v2156 = vmax.f32 %v2028, 0.0
      %v2157 = vmax.f32 %v2029, 0.0
      %v2158 = vmax.f32 %v2030, 0.0
      %v2159 = vmax.f32 %v2031, 0.0
      %v2160 = vmax.f32 %v2032, 0.0
      %v2161 = vmax.f32 %v2033, 0.0
      %v2162 = vmax.f32 %v2034, 0.0
      %v2163 = vmax.f32 %v2035, 0.0
      %v2164 = vmax.f32 %v2036, 0.0
      %v2165 = vmax.f32 %v2037, 0.0
      %v2166 = vmax.f32 %v2038, 0.0
      %v2167 = vmax.f32 %v2039, 0.0
      %v2168 = vmax.f32 %v2040, 0.0
      %v2169 = vmax.f32 %v2041, 0.0
      %v2170 = vmax.f32 %v2042, 0.0
      %v2171 = vmax.f32 %v2043, 0.0
      %v2172 = vmax.f32 %v2044, 0.0
      %v2173 = vmax.f32 %v2045, 0.0
      %v2174 = vmax.f32 %v2046, 0.0
      %v2175 = vmax.f32 %v2047, 0.0
      %v2176 = vmax.f32 %v2048, 0.0
      %v2177 = vmax.f32 %v2049, 0.0
      %v2178 = vmax.f32 %v2050, 0.0
      %v2179 = vmax.f32 %v2051, 0.0
      %v2180 = vmax.f32 %v2052, 0.0
      %v2181 = vmax.f32 %v2053, 0.0
      %v2182 = vmax.f32 %v2054, 0.0
      %v2183 = vmax.f32 %v2055, 0.0
      %v2184 = vmax.f32 %v2056, 0.0
      %v2185 = vmax.f32 %v2057, 0.0
      %v2186 = vmax.f32 %v2058, 0.0
      %v2187 = vmax.f32 %v2059, 0.0
      %v2188 = vmax.f32 %v2060, 0.0
      %v2189 = vmax.f32 %v2061, 0.0
      %v2190 = vpack.c.bf16 %v2063, %v2062
      %v2191 = vpack.c.bf16 %v2065, %v2064
      %v2192 = vpack.c.bf16 %v2067, %v2066
      %v2193 = vpack.c.bf16 %v2069, %v2068
      %v2194 = vpack.c.bf16 %v2071, %v2070
      %v2195 = vpack.c.bf16 %v2073, %v2072
      %v2196 = vpack.c.bf16 %v2075, %v2074
      %v2197 = vpack.c.bf16 %v2077, %v2076
      %v2198 = vpack.c.bf16 %v2079, %v2078
      %v2199 = vpack.c.bf16 %v2081, %v2080
      %v2200 = vpack.c.bf16 %v2083, %v2082
      %v2201 = vpack.c.bf16 %v2085, %v2084
      %v2202 = vpack.c.bf16 %v2087, %v2086
      %v2203 = vpack.c.bf16 %v2089, %v2088
      %v2204 = vpack.c.bf16 %v2091, %v2090
      %v2205 = vpack.c.bf16 %v2093, %v2092
      %v2206 = vpack.c.bf16 %v2095, %v2094
      %v2207 = vpack.c.bf16 %v2097, %v2096
      %v2208 = vpack.c.bf16 %v2099, %v2098
      %v2209 = vpack.c.bf16 %v2101, %v2100
      %v2210 = vpack.c.bf16 %v2103, %v2102
      %v2211 = vpack.c.bf16 %v2105, %v2104
      %v2212 = vpack.c.bf16 %v2107, %v2106
      %v2213 = vpack.c.bf16 %v2109, %v2108
      %v2214 = vpack.c.bf16 %v2111, %v2110
      %v2215 = vpack.c.bf16 %v2113, %v2112
      %v2216 = vpack.c.bf16 %v2115, %v2114
      %v2217 = vpack.c.bf16 %v2117, %v2116
      %v2218 = vpack.c.bf16 %v2119, %v2118
      %v2219 = vpack.c.bf16 %v2121, %v2120
      %v2220 = vpack.c.bf16 %v2123, %v2122
      %v2221 = vpack.c.bf16 %v2125, %v2124
      %v2222 = vpack.c.bf16 %v2127, %v2126
      %v2223 = vpack.c.bf16 %v2129, %v2128
      %v2224 = vpack.c.bf16 %v2131, %v2130
      %v2225 = vpack.c.bf16 %v2133, %v2132
      %v2226 = vpack.c.bf16 %v2135, %v2134
      %v2227 = vpack.c.bf16 %v2137, %v2136
      %v2228 = vpack.c.bf16 %v2139, %v2138
      %v2229 = vpack.c.bf16 %v2141, %v2140
      %v2230 = vpack.c.bf16 %v2143, %v2142
      %v2231 = vpack.c.bf16 %v2145, %v2144
      %v2232 = vpack.c.bf16 %v2147, %v2146
      %v2233 = vpack.c.bf16 %v2149, %v2148
      %v2234 = vpack.c.bf16 %v2151, %v2150
      %v2235 = vpack.c.bf16 %v2153, %v2152
      %v2236 = vpack.c.bf16 %v2155, %v2154
      %v2237 = vpack.c.bf16 %v2157, %v2156
      %v2238 = vpack.c.bf16 %v2159, %v2158
      %v2239 = vpack.c.bf16 %v2161, %v2160
      %v2240 = vpack.c.bf16 %v2163, %v2162
      %v2241 = vpack.c.bf16 %v2165, %v2164
      %v2242 = vpack.c.bf16 %v2167, %v2166
      %v2243 = vpack.c.bf16 %v2169, %v2168
      %v2244 = vpack.c.bf16 %v2171, %v2170
      %v2245 = vpack.c.bf16 %v2173, %v2172
      %v2246 = vpack.c.bf16 %v2175, %v2174
      %v2247 = vpack.c.bf16 %v2177, %v2176
      %v2248 = vpack.c.bf16 %v2179, %v2178
      %v2249 = vpack.c.bf16 %v2181, %v2180
      %v2250 = vpack.c.bf16 %v2183, %v2182
      %v2251 = vpack.c.bf16 %v2185, %v2184
      %v2252 = vpack.c.bf16 %v2187, %v2186
      %v2253 = vpack.c.bf16 %v2189, %v2188
      %v2318 = vunpack.c.l.b16 %v2190
      %v2319 = vunpack.c.h.b16 %v2190
      %v2320 = vunpack.c.l.b16 %v2191
      %v2321 = vunpack.c.h.b16 %v2191
      %v2322 = vunpack.c.l.b16 %v2192
      %v2323 = vunpack.c.h.b16 %v2192
      %v2324 = vunpack.c.l.b16 %v2193
      %v2325 = vunpack.c.h.b16 %v2193
      %v2326 = vunpack.c.l.b16 %v2194
      %v2327 = vunpack.c.h.b16 %v2194
      %v2328 = vunpack.c.l.b16 %v2195
      %v2329 = vunpack.c.h.b16 %v2195
      %v2330 = vunpack.c.l.b16 %v2196
      %v2331 = vunpack.c.h.b16 %v2196
      %v2332 = vunpack.c.l.b16 %v2197
      %v2333 = vunpack.c.h.b16 %v2197
      %v2334 = vunpack.c.l.b16 %v2198
      %v2335 = vunpack.c.h.b16 %v2198
      %v2336 = vunpack.c.l.b16 %v2199
      %v2337 = vunpack.c.h.b16 %v2199
      %v2338 = vunpack.c.l.b16 %v2200
      %v2339 = vunpack.c.h.b16 %v2200
      %v2340 = vunpack.c.l.b16 %v2201
      %v2341 = vunpack.c.h.b16 %v2201
      %v2342 = vunpack.c.l.b16 %v2202
      %v2343 = vunpack.c.h.b16 %v2202
      %v2344 = vunpack.c.l.b16 %v2203
      %v2345 = vunpack.c.h.b16 %v2203
      %v2346 = vunpack.c.l.b16 %v2204
      %v2347 = vunpack.c.h.b16 %v2204
      %v2348 = vunpack.c.l.b16 %v2205
      %v2349 = vunpack.c.h.b16 %v2205
      %v2350 = vunpack.c.l.b16 %v2206
      %v2351 = vunpack.c.h.b16 %v2206
      %v2352 = vunpack.c.l.b16 %v2207
      %v2353 = vunpack.c.h.b16 %v2207
      %v2354 = vunpack.c.l.b16 %v2208
      %v2355 = vunpack.c.h.b16 %v2208
      %v2356 = vunpack.c.l.b16 %v2209
      %v2357 = vunpack.c.h.b16 %v2209
      %v2358 = vunpack.c.l.b16 %v2210
      %v2359 = vunpack.c.h.b16 %v2210
      %v2360 = vunpack.c.l.b16 %v2211
      %v2361 = vunpack.c.h.b16 %v2211
      %v2362 = vunpack.c.l.b16 %v2212
      %v2363 = vunpack.c.h.b16 %v2212
      %v2364 = vunpack.c.l.b16 %v2213
      %v2365 = vunpack.c.h.b16 %v2213
      %v2366 = vunpack.c.l.b16 %v2214
      %v2367 = vunpack.c.h.b16 %v2214
      %v2368 = vunpack.c.l.b16 %v2215
      %v2369 = vunpack.c.h.b16 %v2215
      %v2370 = vunpack.c.l.b16 %v2216
      %v2371 = vunpack.c.h.b16 %v2216
      %v2372 = vunpack.c.l.b16 %v2217
      %v2373 = vunpack.c.h.b16 %v2217
      %v2374 = vunpack.c.l.b16 %v2218
      %v2375 = vunpack.c.h.b16 %v2218
      %v2376 = vunpack.c.l.b16 %v2219
      %v2377 = vunpack.c.h.b16 %v2219
      %v2378 = vunpack.c.l.b16 %v2220
      %v2379 = vunpack.c.h.b16 %v2220
      %v2380 = vunpack.c.l.b16 %v2221
      %v2381 = vunpack.c.h.b16 %v2221
      %v2382 = vunpack.c.l.b16 %v2222
      %v2383 = vunpack.c.h.b16 %v2222
      %v2384 = vunpack.c.l.b16 %v2223
      %v2385 = vunpack.c.h.b16 %v2223
      %v2386 = vunpack.c.l.b16 %v2224
      %v2387 = vunpack.c.h.b16 %v2224
      %v2388 = vunpack.c.l.b16 %v2225
      %v2389 = vunpack.c.h.b16 %v2225
      %v2390 = vunpack.c.l.b16 %v2226
      %v2391 = vunpack.c.h.b16 %v2226
      %v2392 = vunpack.c.l.b16 %v2227
      %v2393 = vunpack.c.h.b16 %v2227
      %v2394 = vunpack.c.l.b16 %v2228
      %v2395 = vunpack.c.h.b16 %v2228
      %v2396 = vunpack.c.l.b16 %v2229
      %v2397 = vunpack.c.h.b16 %v2229
      %v2398 = vunpack.c.l.b16 %v2230
      %v2399 = vunpack.c.h.b16 %v2230
      %v2400 = vunpack.c.l.b16 %v2231
      %v2401 = vunpack.c.h.b16 %v2231
      %v2402 = vunpack.c.l.b16 %v2232
      %v2403 = vunpack.c.h.b16 %v2232
      %v2404 = vunpack.c.l.b16 %v2233
      %v2405 = vunpack.c.h.b16 %v2233
      %v2406 = vunpack.c.l.b16 %v2234
      %v2407 = vunpack.c.h.b16 %v2234
      %v2408 = vunpack.c.l.b16 %v2235
      %v2409 = vunpack.c.h.b16 %v2235
      %v2410 = vunpack.c.l.b16 %v2236
      %v2411 = vunpack.c.h.b16 %v2236
      %v2412 = vunpack.c.l.b16 %v2237
      %v2413 = vunpack.c.h.b16 %v2237
      %v2414 = vunpack.c.l.b16 %v2238
      %v2415 = vunpack.c.h.b16 %v2238
      %v2416 = vunpack.c.l.b16 %v2239
      %v2417 = vunpack.c.h.b16 %v2239
      %v2418 = vunpack.c.l.b16 %v2240
      %v2419 = vunpack.c.h.b16 %v2240
      %v2420 = vunpack.c.l.b16 %v2241
      %v2421 = vunpack.c.h.b16 %v2241
      %v2422 = vunpack.c.l.b16 %v2242
      %v2423 = vunpack.c.h.b16 %v2242
      %v2424 = vunpack.c.l.b16 %v2243
      %v2425 = vunpack.c.h.b16 %v2243
      %v2426 = vunpack.c.l.b16 %v2244
      %v2427 = vunpack.c.h.b16 %v2244
      %v2428 = vunpack.c.l.b16 %v2245
      %v2429 = vunpack.c.h.b16 %v2245
      %v2430 = vunpack.c.l.b16 %v2246
      %v2431 = vunpack.c.h.b16 %v2246
      %v2432 = vunpack.c.l.b16 %v2247
      %v2433 = vunpack.c.h.b16 %v2247
      %v2434 = vunpack.c.l.b16 %v2248
      %v2435 = vunpack.c.h.b16 %v2248
      %v2436 = vunpack.c.l.b16 %v2249
      %v2437 = vunpack.c.h.b16 %v2249
      %v2438 = vunpack.c.l.b16 %v2250
      %v2439 = vunpack.c.h.b16 %v2250
      %v2440 = vunpack.c.l.b16 %v2251
      %v2441 = vunpack.c.h.b16 %v2251
      %v2442 = vunpack.c.l.b16 %v2252
      %v2443 = vunpack.c.h.b16 %v2252
      %v2444 = vunpack.c.l.b16 %v2253
      %v2445 = vunpack.c.h.b16 %v2253
      %v2446 = vpack.c.b16 %v2318, %v2318
      %v2447 = vpack.c.b16 %v2319, %v2319
      %v2448 = vpack.c.b16 %v2320, %v2320
      %v2449 = vpack.c.b16 %v2321, %v2321
      %v2450 = vpack.c.b16 %v2322, %v2322
      %v2451 = vpack.c.b16 %v2323, %v2323
      %v2452 = vpack.c.b16 %v2324, %v2324
      %v2453 = vpack.c.b16 %v2325, %v2325
      %v2454 = vpack.c.b16 %v2326, %v2326
      %v2455 = vpack.c.b16 %v2327, %v2327
      %v2456 = vpack.c.b16 %v2328, %v2328
      %v2457 = vpack.c.b16 %v2329, %v2329
      %v2458 = vpack.c.b16 %v2330, %v2330
      %v2459 = vpack.c.b16 %v2331, %v2331
      %v2460 = vpack.c.b16 %v2332, %v2332
      %v2461 = vpack.c.b16 %v2333, %v2333
      %v2462 = vpack.c.b16 %v2334, %v2334
      %v2463 = vpack.c.b16 %v2335, %v2335
      %v2464 = vpack.c.b16 %v2336, %v2336
      %v2465 = vpack.c.b16 %v2337, %v2337
      %v2466 = vpack.c.b16 %v2338, %v2338
      %v2467 = vpack.c.b16 %v2339, %v2339
      %v2468 = vpack.c.b16 %v2340, %v2340
      %v2469 = vpack.c.b16 %v2341, %v2341
      %v2470 = vpack.c.b16 %v2342, %v2342
      %v2471 = vpack.c.b16 %v2343, %v2343
      %v2472 = vpack.c.b16 %v2344, %v2344
      %v2473 = vpack.c.b16 %v2345, %v2345
      %v2474 = vpack.c.b16 %v2346, %v2346
      %v2475 = vpack.c.b16 %v2347, %v2347
      %v2476 = vpack.c.b16 %v2348, %v2348
      %v2477 = vpack.c.b16 %v2349, %v2349
      %v2478 = vpack.c.b16 %v2350, %v2350
      %v2479 = vpack.c.b16 %v2351, %v2351
      %v2480 = vpack.c.b16 %v2352, %v2352
      %v2481 = vpack.c.b16 %v2353, %v2353
      %v2482 = vpack.c.b16 %v2354, %v2354
      %v2483 = vpack.c.b16 %v2355, %v2355
      %v2484 = vpack.c.b16 %v2356, %v2356
      %v2485 = vpack.c.b16 %v2357, %v2357
      %v2486 = vpack.c.b16 %v2358, %v2358
      %v2487 = vpack.c.b16 %v2359, %v2359
      %v2488 = vpack.c.b16 %v2360, %v2360
      %v2489 = vpack.c.b16 %v2361, %v2361
      %v2490 = vpack.c.b16 %v2362, %v2362
      %v2491 = vpack.c.b16 %v2363, %v2363
      %v2492 = vpack.c.b16 %v2364, %v2364
      %v2493 = vpack.c.b16 %v2365, %v2365
      %v2494 = vpack.c.b16 %v2366, %v2366
      %v2495 = vpack.c.b16 %v2367, %v2367
      %v2496 = vpack.c.b16 %v2368, %v2368
      %v2497 = vpack.c.b16 %v2369, %v2369
      %v2498 = vpack.c.b16 %v2370, %v2370
      %v2499 = vpack.c.b16 %v2371, %v2371
      %v2500 = vpack.c.b16 %v2372, %v2372
      %v2501 = vpack.c.b16 %v2373, %v2373
      %v2502 = vpack.c.b16 %v2374, %v2374
      %v2503 = vpack.c.b16 %v2375, %v2375
      %v2504 = vpack.c.b16 %v2376, %v2376
      %v2505 = vpack.c.b16 %v2377, %v2377
      %v2506 = vpack.c.b16 %v2378, %v2378
      %v2507 = vpack.c.b16 %v2379, %v2379
      %v2508 = vpack.c.b16 %v2380, %v2380
      %v2509 = vpack.c.b16 %v2381, %v2381
      %v2510 = vpack.c.b16 %v2382, %v2382
      %v2511 = vpack.c.b16 %v2383, %v2383
      %v2512 = vpack.c.b16 %v2384, %v2384
      %v2513 = vpack.c.b16 %v2385, %v2385
      %v2514 = vpack.c.b16 %v2386, %v2386
      %v2515 = vpack.c.b16 %v2387, %v2387
      %v2516 = vpack.c.b16 %v2388, %v2388
      %v2517 = vpack.c.b16 %v2389, %v2389
      %v2518 = vpack.c.b16 %v2390, %v2390
      %v2519 = vpack.c.b16 %v2391, %v2391
      %v2520 = vpack.c.b16 %v2392, %v2392
      %v2521 = vpack.c.b16 %v2393, %v2393
      %v2522 = vpack.c.b16 %v2394, %v2394
      %v2523 = vpack.c.b16 %v2395, %v2395
      %v2524 = vpack.c.b16 %v2396, %v2396
      %v2525 = vpack.c.b16 %v2397, %v2397
      %v2526 = vpack.c.b16 %v2398, %v2398
      %v2527 = vpack.c.b16 %v2399, %v2399
      %v2528 = vpack.c.b16 %v2400, %v2400
      %v2529 = vpack.c.b16 %v2401, %v2401
      %v2530 = vpack.c.b16 %v2402, %v2402
      %v2531 = vpack.c.b16 %v2403, %v2403
      %v2532 = vpack.c.b16 %v2404, %v2404
      %v2533 = vpack.c.b16 %v2405, %v2405
      %v2534 = vpack.c.b16 %v2406, %v2406
      %v2535 = vpack.c.b16 %v2407, %v2407
      %v2536 = vpack.c.b16 %v2408, %v2408
      %v2537 = vpack.c.b16 %v2409, %v2409
      %v2538 = vpack.c.b16 %v2410, %v2410
      %v2539 = vpack.c.b16 %v2411, %v2411
      %v2540 = vpack.c.b16 %v2412, %v2412
      %v2541 = vpack.c.b16 %v2413, %v2413
      %v2542 = vpack.c.b16 %v2414, %v2414
      %v2543 = vpack.c.b16 %v2415, %v2415
      %v2544 = vpack.c.b16 %v2416, %v2416
      %v2545 = vpack.c.b16 %v2417, %v2417
      %v2546 = vpack.c.b16 %v2418, %v2418
      %v2547 = vpack.c.b16 %v2419, %v2419
      %v2548 = vpack.c.b16 %v2420, %v2420
      %v2549 = vpack.c.b16 %v2421, %v2421
      %v2550 = vpack.c.b16 %v2422, %v2422
      %v2551 = vpack.c.b16 %v2423, %v2423
      %v2552 = vpack.c.b16 %v2424, %v2424
      %v2553 = vpack.c.b16 %v2425, %v2425
      %v2554 = vpack.c.b16 %v2426, %v2426
      %v2555 = vpack.c.b16 %v2427, %v2427
      %v2556 = vpack.c.b16 %v2428, %v2428
      %v2557 = vpack.c.b16 %v2429, %v2429
      %v2558 = vpack.c.b16 %v2430, %v2430
      %v2559 = vpack.c.b16 %v2431, %v2431
      %v2560 = vpack.c.b16 %v2432, %v2432
      %v2561 = vpack.c.b16 %v2433, %v2433
      %v2562 = vpack.c.b16 %v2434, %v2434
      %v2563 = vpack.c.b16 %v2435, %v2435
      %v2564 = vpack.c.b16 %v2436, %v2436
      %v2565 = vpack.c.b16 %v2437, %v2437
      %v2566 = vpack.c.b16 %v2438, %v2438
      %v2567 = vpack.c.b16 %v2439, %v2439
      %v2568 = vpack.c.b16 %v2440, %v2440
      %v2569 = vpack.c.b16 %v2441, %v2441
      %v2570 = vpack.c.b16 %v2442, %v2442
      %v2571 = vpack.c.b16 %v2443, %v2443
      %v2572 = vpack.c.b16 %v2444, %v2444
      %v2573 = vpack.c.b16 %v2445, %v2445
      %2702 = vst [vmem:[%s267] sm:$0xf] %v2446
      %2703 = vst [vmem:[%s267 + $0x4] sm:$0xf] %v2447
      %2704 = vst [vmem:[%s267 + $0x8] sm:$0xf] %v2448
      %2705 = vst [vmem:[%s267 + $0xc] sm:$0xf] %v2449
      %2706 = vst [vmem:[%s267 + $0x10] sm:$0xf] %v2450
      %2707 = vst [vmem:[%s267 + $0x14] sm:$0xf] %v2451
      %2708 = vst [vmem:[%s267 + $0x18] sm:$0xf] %v2452
      %2709 = vst [vmem:[%s267 + $0x1c] sm:$0xf] %v2453
      %2710 = vst [vmem:[%s267 + $0x20] sm:$0xf] %v2454
      %2711 = vst [vmem:[%s267 + $0x24] sm:$0xf] %v2455
      %2712 = vst [vmem:[%s267 + $0x28] sm:$0xf] %v2456
      %2713 = vst [vmem:[%s267 + $0x2c] sm:$0xf] %v2457
      %2714 = vst [vmem:[%s267 + $0x30] sm:$0xf] %v2458
      %2715 = vst [vmem:[%s267 + $0x34] sm:$0xf] %v2459
      %2716 = vst [vmem:[%s267 + $0x38] sm:$0xf] %v2460
      %2717 = vst [vmem:[%s267 + $0x3c] sm:$0xf] %v2461
      %2718 = vst [vmem:[%s267 + $0x40] sm:$0xf] %v2462
      %2719 = vst [vmem:[%s267 + $0x44] sm:$0xf] %v2463
      %2720 = vst [vmem:[%s267 + $0x48] sm:$0xf] %v2464
      %2721 = vst [vmem:[%s267 + $0x4c] sm:$0xf] %v2465
      %2722 = vst [vmem:[%s267 + $0x50] sm:$0xf] %v2466
      %2723 = vst [vmem:[%s267 + $0x54] sm:$0xf] %v2467
      %2724 = vst [vmem:[%s267 + $0x58] sm:$0xf] %v2468
      %2725 = vst [vmem:[%s267 + $0x5c] sm:$0xf] %v2469
      %2726 = vst [vmem:[%s267 + $0x60] sm:$0xf] %v2470
      %2727 = vst [vmem:[%s267 + $0x64] sm:$0xf] %v2471
      %2728 = vst [vmem:[%s267 + $0x68] sm:$0xf] %v2472
      %2729 = vst [vmem:[%s267 + $0x6c] sm:$0xf] %v2473
      %2730 = vst [vmem:[%s267 + $0x70] sm:$0xf] %v2474
      %2731 = vst [vmem:[%s267 + $0x74] sm:$0xf] %v2475
      %2732 = vst [vmem:[%s267 + $0x78] sm:$0xf] %v2476
      %2733 = vst [vmem:[%s267 + $0x7c] sm:$0xf] %v2477
      %2734 = vst [vmem:[%s267 + $0x80] sm:$0xf] %v2478
      %2735 = vst [vmem:[%s267 + $0x84] sm:$0xf] %v2479
      %2736 = vst [vmem:[%s267 + $0x88] sm:$0xf] %v2480
      %2737 = vst [vmem:[%s267 + $0x8c] sm:$0xf] %v2481
      %2738 = vst [vmem:[%s267 + $0x90] sm:$0xf] %v2482
      %2739 = vst [vmem:[%s267 + $0x94] sm:$0xf] %v2483
      %2740 = vst [vmem:[%s267 + $0x98] sm:$0xf] %v2484
      %2741 = vst [vmem:[%s267 + $0x9c] sm:$0xf] %v2485
      %2742 = vst [vmem:[%s267 + $0xa0] sm:$0xf] %v2486
      %2743 = vst [vmem:[%s267 + $0xa4] sm:$0xf] %v2487
      %2744 = vst [vmem:[%s267 + $0xa8] sm:$0xf] %v2488
      %2745 = vst [vmem:[%s267 + $0xac] sm:$0xf] %v2489
      %2746 = vst [vmem:[%s267 + $0xb0] sm:$0xf] %v2490
      %2747 = vst [vmem:[%s267 + $0xb4] sm:$0xf] %v2491
      %2748 = vst [vmem:[%s267 + $0xb8] sm:$0xf] %v2492
      %2749 = vst [vmem:[%s267 + $0xbc] sm:$0xf] %v2493
      %2750 = vst [vmem:[%s267 + $0xc0] sm:$0xf] %v2494
      %2751 = vst [vmem:[%s267 + $0xc4] sm:$0xf] %v2495
      %2752 = vst [vmem:[%s267 + $0xc8] sm:$0xf] %v2496
      %2753 = vst [vmem:[%s267 + $0xcc] sm:$0xf] %v2497
      %2754 = vst [vmem:[%s267 + $0xd0] sm:$0xf] %v2498
      %2755 = vst [vmem:[%s267 + $0xd4] sm:$0xf] %v2499
      %2756 = vst [vmem:[%s267 + $0xd8] sm:$0xf] %v2500
      %2757 = vst [vmem:[%s267 + $0xdc] sm:$0xf] %v2501
      %2758 = vst [vmem:[%s267 + $0xe0] sm:$0xf] %v2502
      %2759 = vst [vmem:[%s267 + $0xe4] sm:$0xf] %v2503
      %2760 = vst [vmem:[%s267 + $0xe8] sm:$0xf] %v2504
      %2761 = vst [vmem:[%s267 + $0xec] sm:$0xf] %v2505
      %2762 = vst [vmem:[%s267 + $0xf0] sm:$0xf] %v2506
      %2763 = vst [vmem:[%s267 + $0xf4] sm:$0xf] %v2507
      %2764 = vst [vmem:[%s267 + $0xf8] sm:$0xf] %v2508
      %2765 = vst [vmem:[%s267 + $0xfc] sm:$0xf] %v2509
      %2766 = vst [vmem:[%s267 + $0x100] sm:$0xf] %v2510
      %2767 = vst [vmem:[%s267 + $0x104] sm:$0xf] %v2511
      %2768 = vst [vmem:[%s267 + $0x108] sm:$0xf] %v2512
      %2769 = vst [vmem:[%s267 + $0x10c] sm:$0xf] %v2513
      %2770 = vst [vmem:[%s267 + $0x110] sm:$0xf] %v2514
      %2771 = vst [vmem:[%s267 + $0x114] sm:$0xf] %v2515
      %2772 = vst [vmem:[%s267 + $0x118] sm:$0xf] %v2516
      %2773 = vst [vmem:[%s267 + $0x11c] sm:$0xf] %v2517
      %2774 = vst [vmem:[%s267 + $0x120] sm:$0xf] %v2518
      %2775 = vst [vmem:[%s267 + $0x124] sm:$0xf] %v2519
      %2776 = vst [vmem:[%s267 + $0x128] sm:$0xf] %v2520
      %2777 = vst [vmem:[%s267 + $0x12c] sm:$0xf] %v2521
      %2778 = vst [vmem:[%s267 + $0x130] sm:$0xf] %v2522
      %2779 = vst [vmem:[%s267 + $0x134] sm:$0xf] %v2523
      %2780 = vst [vmem:[%s267 + $0x138] sm:$0xf] %v2524
      %2781 = vst [vmem:[%s267 + $0x13c] sm:$0xf] %v2525
      %2782 = vst [vmem:[%s267 + $0x140] sm:$0xf] %v2526
      %2783 = vst [vmem:[%s267 + $0x144] sm:$0xf] %v2527
      %2784 = vst [vmem:[%s267 + $0x148] sm:$0xf] %v2528
      %2785 = vst [vmem:[%s267 + $0x14c] sm:$0xf] %v2529
      %2786 = vst [vmem:[%s267 + $0x150] sm:$0xf] %v2530
      %2787 = vst [vmem:[%s267 + $0x154] sm:$0xf] %v2531
      %2788 = vst [vmem:[%s267 + $0x158] sm:$0xf] %v2532
      %2789 = vst [vmem:[%s267 + $0x15c] sm:$0xf] %v2533
      %2790 = vst [vmem:[%s267 + $0x160] sm:$0xf] %v2534
      %2791 = vst [vmem:[%s267 + $0x164] sm:$0xf] %v2535
      %2792 = vst [vmem:[%s267 + $0x168] sm:$0xf] %v2536
      %2793 = vst [vmem:[%s267 + $0x16c] sm:$0xf] %v2537
      %2794 = vst [vmem:[%s267 + $0x170] sm:$0xf] %v2538
      %2795 = vst [vmem:[%s267 + $0x174] sm:$0xf] %v2539
      %2796 = vst [vmem:[%s267 + $0x178] sm:$0xf] %v2540
      %2797 = vst [vmem:[%s267 + $0x17c] sm:$0xf] %v2541
      %2798 = vst [vmem:[%s267 + $0x180] sm:$0xf] %v2542
      %2799 = vst [vmem:[%s267 + $0x184] sm:$0xf] %v2543
      %2800 = vst [vmem:[%s267 + $0x188] sm:$0xf] %v2544
      %2801 = vst [vmem:[%s267 + $0x18c] sm:$0xf] %v2545
      %2802 = vst [vmem:[%s267 + $0x190] sm:$0xf] %v2546
      %2803 = vst [vmem:[%s267 + $0x194] sm:$0xf] %v2547
      %2804 = vst [vmem:[%s267 + $0x198] sm:$0xf] %v2548
      %2805 = vst [vmem:[%s267 + $0x19c] sm:$0xf] %v2549
      %2806 = vst [vmem:[%s267 + $0x1a0] sm:$0xf] %v2550
      %2807 = vst [vmem:[%s267 + $0x1a4] sm:$0xf] %v2551
      %2808 = vst [vmem:[%s267 + $0x1a8] sm:$0xf] %v2552
      %2809 = vst [vmem:[%s267 + $0x1ac] sm:$0xf] %v2553
      %2810 = vst [vmem:[%s267 + $0x1b0] sm:$0xf] %v2554
      %2811 = vst [vmem:[%s267 + $0x1b4] sm:$0xf] %v2555
      %2812 = vst [vmem:[%s267 + $0x1b8] sm:$0xf] %v2556
      %2813 = vst [vmem:[%s267 + $0x1bc] sm:$0xf] %v2557
      %2814 = vst [vmem:[%s267 + $0x1c0] sm:$0xf] %v2558
      %2815 = vst [vmem:[%s267 + $0x1c4] sm:$0xf] %v2559
      %2816 = vst [vmem:[%s267 + $0x1c8] sm:$0xf] %v2560
      %2817 = vst [vmem:[%s267 + $0x1cc] sm:$0xf] %v2561
      %2818 = vst [vmem:[%s267 + $0x1d0] sm:$0xf] %v2562
      %2819 = vst [vmem:[%s267 + $0x1d4] sm:$0xf] %v2563
      %2820 = vst [vmem:[%s267 + $0x1d8] sm:$0xf] %v2564
      %2821 = vst [vmem:[%s267 + $0x1dc] sm:$0xf] %v2565
      %2822 = vst [vmem:[%s267 + $0x1e0] sm:$0xf] %v2566
      %2823 = vst [vmem:[%s267 + $0x1e4] sm:$0xf] %v2567
      %2824 = vst [vmem:[%s267 + $0x1e8] sm:$0xf] %v2568
      %2825 = vst [vmem:[%s267 + $0x1ec] sm:$0xf] %v2569
      %2826 = vst [vmem:[%s267 + $0x1f0] sm:$0xf] %v2570
      %2827 = vst [vmem:[%s267 + $0x1f4] sm:$0xf] %v2571
      %2828 = vst [vmem:[%s267 + $0x1f8] sm:$0xf] %v2572
      %2829 = vst [vmem:[%s267 + $0x1fc] sm:$0xf] %v2573
      %s2830 = smul.u32 128, %s19
      %p2831 = scmp.lt.s32.totalorder %s2830, 255
      %s2832 = scalar_select %p2831, %s2830, 255
      %p2833 = scmp.lt.s32.totalorder %s20, 0
      %s2834 = scalar_select %p2833, %s20, 0
      %s2835 = sadd.s32 %s2834, %s2832
      %s2836 = smul.addr %s2835, 4
      %s2837 = scalar_lea.vmem %s4, %s2836
      // Predicated region
      $region37: #{_matmul_impl.1} parent=35 // pred_check
        %p2838 = pneg %p151
      $region38: #{_matmul_impl.1} parent=35 // pred_check_branch
        %2840 = sbr.rel (%p2838) target = $region40
      $region39: #{_matmul_impl.1} parent=35 // pred_region
        %s2841 = smul.u32 128, %s19
      $region40: #{_matmul_impl.1} parent=35 // pred_fallthru
        _
    $region36: #{_matmul_impl.1} parent=5 // pred_fallthru
      _
    %p2842 = scmp.le.s32.totalorder 2, %s10
    // Predicated region
    $region41: #{_matmul_impl.1} parent=5 // pred_check
      %p2843 = pneg %p2842
    $region42: #{_matmul_impl.1} parent=5 // pred_check_branch
      %2845 = sbr.rel (%p2843) target = $region44
    $region43: #{_matmul_impl.1} parent=5 // pred_region
      %s2846 = ssub.s32 %s10, 2
      // Predicated region
      $region45: #{_matmul_impl.1} parent=43 // pred_check
        %p2847 = pneg %p157
      $region46: #{_matmul_impl.1} parent=43 // pred_check_branch
        %2849 = sbr.rel (%p2847) target = $region48
      $region47: #{_matmul_impl.1} parent=43 // pred_region
        %s2850 = smul.u32 128, %s21
        %p2851 = scmp.lt.s32.totalorder %s2850, 255
        %s2852 = scalar_select %p2851, %s2850, 255
        %p2853 = scmp.lt.s32.totalorder %s22, 0
        %s2854 = scalar_select %p2853, %s22, 0
        %s2855 = sadd.s32 %s2854, %s2852
        %s2856 = smul.addr %s2855, 4
        %s2857 = scalar_lea.vmem %s4, %s2856
      $region48: #{_matmul_impl.1} parent=43 // pred_fallthru
        _
    $region44: #{_matmul_impl.1} parent=5 // pred_fallthru
      _
  $region6: #{_matmul_impl.1} parent=0 // loop_footer
    %s14 = sadd.s32 1, %s10
  $region7: #{_matmul_impl.1} parent=0 // loop_footer_branch
    %9 = sbr.rel target = $region3
  $region8: #{_matmul_impl.1} parent=0 // loop_exit
    _

</llo_original>
